<compile_context>
chip_gen: v5e
topology: v5e:2x2
jax: 0.10.0
libtpu: 0.0.40
codegen_flags: <defaults>
</compile_context>

<pallas_src>
import jax
import jax.numpy as jnp
from jax import lax
from jax.experimental import pallas as pl
from jax.experimental.pallas import tpu as pltpu


def _round_up(x, m):
    return (x + m - 1) // m * m


def gru_seq_kernel(ig_ref,    # (T, 3Hp) f32  precomputed i_r|i_z|i_n (b_ih folded)
                   h0_ref,    # (1, Hp)  f32  initial hidden
                   w_h_ref,   # (Hp,3Hp) bf16 packed [W_hr|W_hz|W_hn] (h @ W form)
                   b_h_ref,   # (1, 3Hp) f32  packed b_hr|b_hz|b_hn
                   out_ref):  # (T, Hp)  f32  h_t per step
    T = out_ref.shape[0]
    hp = h0_ref.shape[-1]

    # Hoisted loads: weights / biases stay in vregs across the whole loop.
    w_h = w_h_ref[...]
    b_h = b_h_ref[...]

    def step(t, h):
        ig = ig_ref[pl.ds(t, 1), :]                               # (1, 3Hp)
        # Single fused recurrent matmul on the serial path (K = Hp).
        hg = jnp.dot(h.astype(jnp.bfloat16), w_h,
                     preferred_element_type=jnp.float32) + b_h     # (1, 3Hp)
        # PyTorch GRU gate equations (gate panels are 128-lane aligned).
        r = jax.nn.sigmoid(ig[:, :hp] + hg[:, :hp])
        z = jax.nn.sigmoid(ig[:, hp:2 * hp] + hg[:, hp:2 * hp])
        n = jnp.tanh(ig[:, 2 * hp:] + r * hg[:, 2 * hp:])
        h_new = (1.0 - z) * n + z * h
        out_ref[pl.ds(t, 1), :] = h_new
        return h_new

    lax.fori_loop(0, T, step, h0_ref[...], unroll=min(T, 8))


def gru_sequence_pallas(i_gates, h0, w_h, b_h):
    """Runs the full GRU recurrence in one (grid-less) pallas_call.

    i_gates: (T, 3Hp) f32 precomputed input projection; returns (T, Hp) f32."""
    T, G = i_gates.shape
    Hp = h0.shape[-1]

    vmem = pl.BlockSpec(memory_space=pltpu.MemorySpace.VMEM)

    flops = T * 2 * Hp * G + T * 10 * Hp
    transcendentals = T * 3 * Hp
    bytes_accessed = (w_h.size * 2 + (i_gates.size + h0.size + b_h.size) * 4
                      + T * Hp * 4)

    return pl.pallas_call(
        gru_seq_kernel,
        out_shape=jax.ShapeDtypeStruct((T, Hp), jnp.float32),
        in_specs=[vmem, vmem, vmem, vmem],
        out_specs=vmem,
        cost_estimate=pl.CostEstimate(
            flops=flops, transcendentals=transcendentals,
            bytes_accessed=bytes_accessed),
    )(i_gates, h0, w_h, b_h)


class EncoderRNNPallas:
    """JAX/Pallas re-implementation of the PyTorch EncoderRNN forward pass."""
    GRU_layern = 1

    def __init__(self, input_size, hidden_size, key):
        self.input_size = input_size
        self.hidden_size = hidden_size
        H = hidden_size
        Hp = _round_up(max(H, 128), 128)
        self.Hp = Hp

        k_emb, k_wih, k_whh, k_bih, k_bhh = jax.random.split(key, 5)
        # PyTorch defaults: Embedding ~ N(0,1); GRU ~ U(-1/sqrt(H), 1/sqrt(H)).
        self.embedding = jax.random.normal(k_emb, (input_size, H), dtype=jnp.float32)
        bound = 1.0 / (H ** 0.5)
        self.w_ih = jax.random.uniform(k_wih, (3 * H, H), minval=-bound, maxval=bound,
                                       dtype=jnp.float32)
        self.w_hh = jax.random.uniform(k_whh, (3 * H, H), minval=-bound, maxval=bound,
                                       dtype=jnp.float32)
        self.b_ih = jax.random.uniform(k_bih, (3 * H,), minval=-bound, maxval=bound,
                                       dtype=jnp.float32)
        self.b_hh = jax.random.uniform(k_bhh, (3 * H,), minval=-bound, maxval=bound,
                                       dtype=jnp.float32)

        # ---- kernel-side parameter layout (lane-padded, gate-aligned, bf16) ----
        wir, wiz, win = self.w_ih[:H], self.w_ih[H:2 * H], self.w_ih[2 * H:]
        whr, whz, whn = self.w_hh[:H], self.w_hh[H:2 * H], self.w_hh[2 * H:]

        def pack_w(wr, wz, wn):
            w = jnp.zeros((Hp, 3 * Hp), jnp.float32)
            w = w.at[:H, :H].set(wr.T)
            w = w.at[:H, Hp:Hp + H].set(wz.T)
            w = w.at[:H, 2 * Hp:2 * Hp + H].set(wn.T)
            return w.astype(jnp.bfloat16)

        def pack_b(b):
            bb = jnp.zeros((1, 3 * Hp), jnp.float32)
            bb = bb.at[0, :H].set(b[:H])
            bb = bb.at[0, Hp:Hp + H].set(b[H:2 * H])
            bb = bb.at[0, 2 * Hp:2 * Hp + H].set(b[2 * H:])
            return bb

        self.w_i = pack_w(wir, wiz, win)     # (Hp, 3Hp) bf16, used outside the kernel
        self.w_h = pack_w(whr, whz, whn)     # (Hp, 3Hp) bf16, resident in the kernel
        self.b_i = pack_b(self.b_ih)         # folded into the precomputed i-gates
        self.b_h = pack_b(self.b_hh)

        # Lane-padded embedding table (stays in HBM; the lookup is plain XLA).
        self.emb_p = (jnp.zeros((input_size, Hp), jnp.float32)
                      .at[:, :H].set(self.embedding))

    def init_hidden(self):
        return jnp.zeros((self.GRU_layern, 1, self.hidden_size), dtype=jnp.float32)

    def forward_sequence(self, tokens, hidden):
        """tokens: (T,) int; hidden: (1,1,H). Input projection is done with plain
        XLA (batched over T, off the serial path); one fused Pallas kernel runs
        the recurrence. Returns (outputs (T,1,H), hidden (1,1,H))."""
        H, Hp = self.hidden_size, self.Hp
        tokens = jnp.asarray(tokens, jnp.int32).reshape(-1)
        tokens = jnp.clip(tokens, 0, self.input_size - 1)   # bounds-safe lookup
        T = int(tokens.shape[0])

        # Hoisted x-projection: Embedding[tokens] @ [W_ir|W_iz|W_in] + b_ih.
        x = jnp.take(self.emb_p, tokens, axis=0).astype(jnp.bfloat16)      # (T, Hp)
        i_gates = jnp.dot(x, self.w_i,
                          preferred_element_type=jnp.float32) + self.b_i   # (T, 3Hp)

        h0 = jnp.zeros((1, Hp), jnp.float32).at[:, :H].set(hidden.reshape(1, H))
        outs_p = gru_sequence_pallas(i_gates, h0, self.w_h, self.b_h)
        outs = outs_p[:, :H]
        return outs.reshape(T, 1, H), outs[T - 1].reshape(1, 1, H)

    def forward(self, token_idx, hidden):
        """Single-token step — same semantics as the PyTorch module's forward."""
        outs, h_new = self.forward_sequence(jnp.reshape(token_idx, (1,)), hidden)
        return outs.reshape(1, 1, self.hidden_size), h_new


def _reference_forward_sequence(enc, tokens, hidden):
    """Pure-JAX GRU reference (PyTorch nn.GRU equations) with the same bf16
    weight/activation rounding as the kernel (f32 accumulation, f32 gate math)."""
    H = enc.hidden_size
    w_ih = enc.w_ih.astype(jnp.bfloat16)
    w_hh = enc.w_hh.astype(jnp.bfloat16)
    h = hidden.reshape(H).astype(jnp.float32)
    outs = []
    for t in range(int(tokens.shape[0])):
        x = enc.embedding[tokens[t]]
        xb = x.astype(jnp.bfloat16)
        hb = h.astype(jnp.bfloat16)
        gi = jnp.dot(xb, w_ih.T, preferred_element_type=jnp.float32) + enc.b_ih
        gh = jnp.dot(hb, w_hh.T, preferred_element_type=jnp.float32) + enc.b_hh
        r = jax.nn.sigmoid(gi[:H] + gh[:H])
        z = jax.nn.sigmoid(gi[H:2 * H] + gh[H:2 * H])
        n = jnp.tanh(gi[2 * H:] + r * gh[2 * H:])
        h = (1.0 - z) * n + z * h
        outs.append(h)
    return jnp.stack(outs).reshape(-1, 1, H), h.reshape(1, 1, H)


if __name__ == "__main__":
    key = jax.random.PRNGKey(0)

    # Module-consistent shapes (spec uses hidden_size=256); small vocab / short seq.
    vocab, hidden, seq_len = 32, 256, 8
    enc = EncoderRNNPallas(vocab, hidden, key)

    tokens = jax.random.randint(jax.random.PRNGKey(1), (seq_len,), 0, vocab,
                                dtype=jnp.int32)
    h0 = enc.init_hidden()

    outs, h_last = enc.forward_sequence(tokens, h0)
    outs = jax.block_until_ready(outs)
    h_last = jax.block_until_ready(h_last)

    ref_outs, ref_h = _reference_forward_sequence(enc, tokens, h0)
    assert outs.shape == (seq_len, 1, hidden)
    assert h_last.shape == (1, 1, hidden)
    err = float(jnp.max(jnp.abs(outs - ref_outs)))
    assert err < 1e-2, f"sequence mismatch vs reference: max|diff|={err}"
    assert float(jnp.max(jnp.abs(h_last - ref_h))) < 1e-2

    # Single-token forward() — the literal PyTorch-module signature.
    out1, h1 = enc.forward(tokens[0], h0)
    out1 = jax.block_until_ready(out1)
    assert out1.shape == (1, 1, hidden) and h1.shape == (1, 1, hidden)
    err1 = float(jnp.max(jnp.abs(out1 - ref_outs[0].reshape(1, 1, hidden))))
    assert err1 < 1e-2, f"single-step mismatch vs reference: max|diff|={err1}"

    # Small non-128-aligned hidden size to exercise the lane-padding path.
    enc_s = EncoderRNNPallas(16, 32, jax.random.PRNGKey(2))
    toks_s = jax.random.randint(jax.random.PRNGKey(3), (5,), 0, 16, dtype=jnp.int32)
    outs_s, _ = enc_s.forward_sequence(toks_s, enc_s.init_hidden())
    outs_s = jax.block_until_ready(outs_s)
    ref_s, _ = _reference_forward_sequence(enc_s, toks_s, enc_s.init_hidden())
    err_s = float(jnp.max(jnp.abs(outs_s - ref_s)))
    assert err_s < 1e-2, f"padded-H mismatch vs reference: max|diff|={err_s}"

    print("KERNEL_OK")
</pallas_src>

<mosaic_0001>
module attributes {stable_mosaic.version = 11 : i64} {
  func.func @gru_seq_kernel(%arg0: memref<8x768xf32, #tpu.memory_space<vmem>>, %arg1: memref<1x256xf32, #tpu.memory_space<vmem>>, %arg2: memref<256x768xbf16, #tpu.memory_space<vmem>>, %arg3: memref<1x768xf32, #tpu.memory_space<vmem>>, %arg4: memref<8x256xf32, #tpu.memory_space<vmem>>) attributes {dimension_semantics = [], scalar_prefetch = 0 : i64, scratch_operands = 0 : i64, tpu.core_type = #tpu.core_type<tc>} {
    %c0 = arith.constant 0 : index
    %c0_0 = arith.constant 0 : index
    %0 = vector.load %arg2[%c0, %c0_0] : memref<256x768xbf16, #tpu.memory_space<vmem>>, vector<256x768xbf16>
    %c0_1 = arith.constant 0 : index
    %c0_2 = arith.constant 0 : index
    %1 = vector.load %arg3[%c0_1, %c0_2] : memref<1x768xf32, #tpu.memory_space<vmem>>, vector<1x768xf32>
    %c0_3 = arith.constant 0 : index
    %c0_4 = arith.constant 0 : index
    %2 = vector.load %arg1[%c0_3, %c0_4] : memref<1x256xf32, #tpu.memory_space<vmem>>, vector<1x256xf32>
    %c0_i32 = arith.constant 0 : i32
    %3 = arith.index_cast %c0_i32 : i32 to index
    %c0_5 = arith.constant 0 : index
    %4 = vector.load %arg0[%3, %c0_5] : memref<8x768xf32, #tpu.memory_space<vmem>>, vector<1x768xf32>
    %5 = arith.truncf %2 : vector<1x256xf32> to vector<1x256xbf16>
    %cst = arith.constant dense<0.000000e+00> : vector<1x768xf32>
    %6 = tpu.matmul %5, %0, %cst {dimension_numbers = #tpu.dot_dimension_numbers<[1], [0], [0], [1], [0, 0, 1, 1], [], []>} : vector<1x256xbf16>, vector<256x768xbf16>, vector<1x768xf32> -> vector<1x768xf32>
    %7 = arith.addf %6, %1 : vector<1x768xf32>
    %8 = vector.extract_strided_slice %4 {offsets = [0, 0], sizes = [1, 256], strides = [1, 1]} : vector<1x768xf32> to vector<1x256xf32>
    %9 = vector.extract_strided_slice %7 {offsets = [0, 0], sizes = [1, 256], strides = [1, 1]} : vector<1x768xf32> to vector<1x256xf32>
    %10 = arith.addf %8, %9 : vector<1x256xf32>
    %11 = arith.negf %10 : vector<1x256xf32>
    %12 = math.exp %11 : vector<1x256xf32>
    %cst_6 = arith.constant 1.000000e+00 : f32
    %13 = vector.broadcast %cst_6 : f32 to vector<1x256xf32>
    %14 = arith.addf %13, %12 : vector<1x256xf32>
    %15 = arith.divf %13, %14 : vector<1x256xf32>
    %16 = vector.extract_strided_slice %4 {offsets = [0, 256], sizes = [1, 256], strides = [1, 1]} : vector<1x768xf32> to vector<1x256xf32>
    %17 = vector.extract_strided_slice %7 {offsets = [0, 256], sizes = [1, 256], strides = [1, 1]} : vector<1x768xf32> to vector<1x256xf32>
    %18 = arith.addf %16, %17 : vector<1x256xf32>
    %19 = arith.negf %18 : vector<1x256xf32>
    %20 = math.exp %19 : vector<1x256xf32>
    %cst_7 = arith.constant 1.000000e+00 : f32
    %21 = vector.broadcast %cst_7 : f32 to vector<1x256xf32>
    %22 = arith.addf %21, %20 : vector<1x256xf32>
    %23 = arith.divf %21, %22 : vector<1x256xf32>
    %24 = vector.extract_strided_slice %4 {offsets = [0, 512], sizes = [1, 256], strides = [1, 1]} : vector<1x768xf32> to vector<1x256xf32>
    %25 = vector.extract_strided_slice %7 {offsets = [0, 512], sizes = [1, 256], strides = [1, 1]} : vector<1x768xf32> to vector<1x256xf32>
    %26 = arith.mulf %15, %25 : vector<1x256xf32>
    %27 = arith.addf %24, %26 : vector<1x256xf32>
    %28 = math.tanh %27 : vector<1x256xf32>
    %cst_8 = arith.constant 1.000000e+00 : f32
    %29 = vector.broadcast %cst_8 : f32 to vector<1x256xf32>
    %30 = arith.subf %29, %23 : vector<1x256xf32>
    %31 = arith.mulf %30, %28 : vector<1x256xf32>
    %32 = arith.mulf %23, %2 : vector<1x256xf32>
    %33 = arith.addf %31, %32 : vector<1x256xf32>
    %34 = arith.index_cast %c0_i32 : i32 to index
    %c0_9 = arith.constant 0 : index
    %35 = vector.load %arg4[%34, %c0_9] : memref<8x256xf32, #tpu.memory_space<vmem>>, vector<1x256xf32>
    tpu.vector_store %arg4[%34, %c0_9], %33 {strides = array<i32>} : memref<8x256xf32, #tpu.memory_space<vmem>>, vector<1x256xf32>,
    %c1_i32 = arith.constant 1 : i32
    %36 = arith.index_cast %c1_i32 : i32 to index
    %c0_10 = arith.constant 0 : index
    %37 = vector.load %arg0[%36, %c0_10] : memref<8x768xf32, #tpu.memory_space<vmem>>, vector<1x768xf32>
    %38 = arith.truncf %33 : vector<1x256xf32> to vector<1x256xbf16>
    %cst_11 = arith.constant dense<0.000000e+00> : vector<1x768xf32>
    %39 = tpu.matmul %38, %0, %cst_11 {dimension_numbers = #tpu.dot_dimension_numbers<[1], [0], [0], [1], [0, 0, 1, 1], [], []>} : vector<1x256xbf16>, vector<256x768xbf16>, vector<1x768xf32> -> vector<1x768xf32>
    %40 = arith.addf %39, %1 : vector<1x768xf32>
    %41 = vector.extract_strided_slice %37 {offsets = [0, 0], sizes = [1, 256], strides = [1, 1]} : vector<1x768xf32> to vector<1x256xf32>
    %42 = vector.extract_strided_slice %40 {offsets = [0, 0], sizes = [1, 256], strides = [1, 1]} : vector<1x768xf32> to vector<1x256xf32>
    %43 = arith.addf %41, %42 : vector<1x256xf32>
    %44 = arith.negf %43 : vector<1x256xf32>
    %45 = math.exp %44 : vector<1x256xf32>
    %cst_12 = arith.constant 1.000000e+00 : f32
    %46 = vector.broadcast %cst_12 : f32 to vector<1x256xf32>
    %47 = arith.addf %46, %45 : vector<1x256xf32>
    %48 = arith.divf %46, %47 : vector<1x256xf32>
    %49 = vector.extract_strided_slice %37 {offsets = [0, 256], sizes = [1, 256], strides = [1, 1]} : vector<1x768xf32> to vector<1x256xf32>
    %50 = vector.extract_strided_slice %40 {offsets = [0, 256], sizes = [1, 256], strides = [1, 1]} : vector<1x768xf32> to vector<1x256xf32>
    %51 = arith.addf %49, %50 : vector<1x256xf32>
    %52 = arith.negf %51 : vector<1x256xf32>
    %53 = math.exp %52 : vector<1x256xf32>
    %cst_13 = arith.constant 1.000000e+00 : f32
    %54 = vector.broadcast %cst_13 : f32 to vector<1x256xf32>
    %55 = arith.addf %54, %53 : vector<1x256xf32>
    %56 = arith.divf %54, %55 : vector<1x256xf32>
    %57 = vector.extract_strided_slice %37 {offsets = [0, 512], sizes = [1, 256], strides = [1, 1]} : vector<1x768xf32> to vector<1x256xf32>
    %58 = vector.extract_strided_slice %40 {offsets = [0, 512], sizes = [1, 256], strides = [1, 1]} : vector<1x768xf32> to vector<1x256xf32>
    %59 = arith.mulf %48, %58 : vector<1x256xf32>
    %60 = arith.addf %57, %59 : vector<1x256xf32>
    %61 = math.tanh %60 : vector<1x256xf32>
    %cst_14 = arith.constant 1.000000e+00 : f32
    %62 = vector.broadcast %cst_14 : f32 to vector<1x256xf32>
    %63 = arith.subf %62, %56 : vector<1x256xf32>
    %64 = arith.mulf %63, %61 : vector<1x256xf32>
    %65 = arith.mulf %56, %33 : vector<1x256xf32>
    %66 = arith.addf %64, %65 : vector<1x256xf32>
    %67 = arith.index_cast %c1_i32 : i32 to index
    %c0_15 = arith.constant 0 : index
    %68 = vector.load %arg4[%67, %c0_15] : memref<8x256xf32, #tpu.memory_space<vmem>>, vector<1x256xf32>
    tpu.vector_store %arg4[%67, %c0_15], %66 {strides = array<i32>} : memref<8x256xf32, #tpu.memory_space<vmem>>, vector<1x256xf32>,
    %c2_i32 = arith.constant 2 : i32
    %69 = arith.index_cast %c2_i32 : i32 to index
    %c0_16 = arith.constant 0 : index
    %70 = vector.load %arg0[%69, %c0_16] : memref<8x768xf32, #tpu.memory_space<vmem>>, vector<1x768xf32>
    %71 = arith.truncf %66 : vector<1x256xf32> to vector<1x256xbf16>
    %cst_17 = arith.constant dense<0.000000e+00> : vector<1x768xf32>
    %72 = tpu.matmul %71, %0, %cst_17 {dimension_numbers = #tpu.dot_dimension_numbers<[1], [0], [0], [1], [0, 0, 1, 1], [], []>} : vector<1x256xbf16>, vector<256x768xbf16>, vector<1x768xf32> -> vector<1x768xf32>
    %73 = arith.addf %72, %1 : vector<1x768xf32>
    %74 = vector.extract_strided_slice %70 {offsets = [0, 0], sizes = [1, 256], strides = [1, 1]} : vector<1x768xf32> to vector<1x256xf32>
    %75 = vector.extract_strided_slice %73 {offsets = [0, 0], sizes = [1, 256], strides = [1, 1]} : vector<1x768xf32> to vector<1x256xf32>
    %76 = arith.addf %74, %75 : vector<1x256xf32>
    %77 = arith.negf %76 : vector<1x256xf32>
    %78 = math.exp %77 : vector<1x256xf32>
    %cst_18 = arith.constant 1.000000e+00 : f32
    %79 = vector.broadcast %cst_18 : f32 to vector<1x256xf32>
    %80 = arith.addf %79, %78 : vector<1x256xf32>
    %81 = arith.divf %79, %80 : vector<1x256xf32>
    %82 = vector.extract_strided_slice %70 {offsets = [0, 256], sizes = [1, 256], strides = [1, 1]} : vector<1x768xf32> to vector<1x256xf32>
    %83 = vector.extract_strided_slice %73 {offsets = [0, 256], sizes = [1, 256], strides = [1, 1]} : vector<1x768xf32> to vector<1x256xf32>
    %84 = arith.addf %82, %83 : vector<1x256xf32>
    %85 = arith.negf %84 : vector<1x256xf32>
    %86 = math.exp %85 : vector<1x256xf32>
    %cst_19 = arith.constant 1.000000e+00 : f32
    %87 = vector.broadcast %cst_19 : f32 to vector<1x256xf32>
    %88 = arith.addf %87, %86 : vector<1x256xf32>
    %89 = arith.divf %87, %88 : vector<1x256xf32>
    %90 = vector.extract_strided_slice %70 {offsets = [0, 512], sizes = [1, 256], strides = [1, 1]} : vector<1x768xf32> to vector<1x256xf32>
    %91 = vector.extract_strided_slice %73 {offsets = [0, 512], sizes = [1, 256], strides = [1, 1]} : vector<1x768xf32> to vector<1x256xf32>
    %92 = arith.mulf %81, %91 : vector<1x256xf32>
    %93 = arith.addf %90, %92 : vector<1x256xf32>
    %94 = math.tanh %93 : vector<1x256xf32>
    %cst_20 = arith.constant 1.000000e+00 : f32
    %95 = vector.broadcast %cst_20 : f32 to vector<1x256xf32>
    %96 = arith.subf %95, %89 : vector<1x256xf32>
    %97 = arith.mulf %96, %94 : vector<1x256xf32>
    %98 = arith.mulf %89, %66 : vector<1x256xf32>
    %99 = arith.addf %97, %98 : vector<1x256xf32>
    %100 = arith.index_cast %c2_i32 : i32 to index
    %c0_21 = arith.constant 0 : index
    %101 = vector.load %arg4[%100, %c0_21] : memref<8x256xf32, #tpu.memory_space<vmem>>, vector<1x256xf32>
    tpu.vector_store %arg4[%100, %c0_21], %99 {strides = array<i32>} : memref<8x256xf32, #tpu.memory_space<vmem>>, vector<1x256xf32>,
    %c3_i32 = arith.constant 3 : i32
    %102 = arith.index_cast %c3_i32 : i32 to index
    %c0_22 = arith.constant 0 : index
    %103 = vector.load %arg0[%102, %c0_22] : memref<8x768xf32, #tpu.memory_space<vmem>>, vector<1x768xf32>
    %104 = arith.truncf %99 : vector<1x256xf32> to vector<1x256xbf16>
    %cst_23 = arith.constant dense<0.000000e+00> : vector<1x768xf32>
    %105 = tpu.matmul %104, %0, %cst_23 {dimension_numbers = #tpu.dot_dimension_numbers<[1], [0], [0], [1], [0, 0, 1, 1], [], []>} : vector<1x256xbf16>, vector<256x768xbf16>, vector<1x768xf32> -> vector<1x768xf32>
    %106 = arith.addf %105, %1 : vector<1x768xf32>
    %107 = vector.extract_strided_slice %103 {offsets = [0, 0], sizes = [1, 256], strides = [1, 1]} : vector<1x768xf32> to vector<1x256xf32>
    %108 = vector.extract_strided_slice %106 {offsets = [0, 0], sizes = [1, 256], strides = [1, 1]} : vector<1x768xf32> to vector<1x256xf32>
    %109 = arith.addf %107, %108 : vector<1x256xf32>
    %110 = arith.negf %109 : vector<1x256xf32>
    %111 = math.exp %110 : vector<1x256xf32>
    %cst_24 = arith.constant 1.000000e+00 : f32
    %112 = vector.broadcast %cst_24 : f32 to vector<1x256xf32>
    %113 = arith.addf %112, %111 : vector<1x256xf32>
    %114 = arith.divf %112, %113 : vector<1x256xf32>
    %115 = vector.extract_strided_slice %103 {offsets = [0, 256], sizes = [1, 256], strides = [1, 1]} : vector<1x768xf32> to vector<1x256xf32>
    %116 = vector.extract_strided_slice %106 {offsets = [0, 256], sizes = [1, 256], strides = [1, 1]} : vector<1x768xf32> to vector<1x256xf32>
    %117 = arith.addf %115, %116 : vector<1x256xf32>
    %118 = arith.negf %117 : vector<1x256xf32>
    %119 = math.exp %118 : vector<1x256xf32>
    %cst_25 = arith.constant 1.000000e+00 : f32
    %120 = vector.broadcast %cst_25 : f32 to vector<1x256xf32>
    %121 = arith.addf %120, %119 : vector<1x256xf32>
    %122 = arith.divf %120, %121 : vector<1x256xf32>
    %123 = vector.extract_strided_slice %103 {offsets = [0, 512], sizes = [1, 256], strides = [1, 1]} : vector<1x768xf32> to vector<1x256xf32>
    %124 = vector.extract_strided_slice %106 {offsets = [0, 512], sizes = [1, 256], strides = [1, 1]} : vector<1x768xf32> to vector<1x256xf32>
    %125 = arith.mulf %114, %124 : vector<1x256xf32>
    %126 = arith.addf %123, %125 : vector<1x256xf32>
    %127 = math.tanh %126 : vector<1x256xf32>
    %cst_26 = arith.constant 1.000000e+00 : f32
    %128 = vector.broadcast %cst_26 : f32 to vector<1x256xf32>
    %129 = arith.subf %128, %122 : vector<1x256xf32>
    %130 = arith.mulf %129, %127 : vector<1x256xf32>
    %131 = arith.mulf %122, %99 : vector<1x256xf32>
    %132 = arith.addf %130, %131 : vector<1x256xf32>
    %133 = arith.index_cast %c3_i32 : i32 to index
    %c0_27 = arith.constant 0 : index
    %134 = vector.load %arg4[%133, %c0_27] : memref<8x256xf32, #tpu.memory_space<vmem>>, vector<1x256xf32>
    tpu.vector_store %arg4[%133, %c0_27], %132 {strides = array<i32>} : memref<8x256xf32, #tpu.memory_space<vmem>>, vector<1x256xf32>,
    %c4_i32 = arith.constant 4 : i32
    %135 = arith.index_cast %c4_i32 : i32 to index
    %c0_28 = arith.constant 0 : index
    %136 = vector.load %arg0[%135, %c0_28] : memref<8x768xf32, #tpu.memory_space<vmem>>, vector<1x768xf32>
    %137 = arith.truncf %132 : vector<1x256xf32> to vector<1x256xbf16>
    %cst_29 = arith.constant dense<0.000000e+00> : vector<1x768xf32>
    %138 = tpu.matmul %137, %0, %cst_29 {dimension_numbers = #tpu.dot_dimension_numbers<[1], [0], [0], [1], [0, 0, 1, 1], [], []>} : vector<1x256xbf16>, vector<256x768xbf16>, vector<1x768xf32> -> vector<1x768xf32>
    %139 = arith.addf %138, %1 : vector<1x768xf32>
    %140 = vector.extract_strided_slice %136 {offsets = [0, 0], sizes = [1, 256], strides = [1, 1]} : vector<1x768xf32> to vector<1x256xf32>
    %141 = vector.extract_strided_slice %139 {offsets = [0, 0], sizes = [1, 256], strides = [1, 1]} : vector<1x768xf32> to vector<1x256xf32>
    %142 = arith.addf %140, %141 : vector<1x256xf32>
    %143 = arith.negf %142 : vector<1x256xf32>
    %144 = math.exp %143 : vector<1x256xf32>
    %cst_30 = arith.constant 1.000000e+00 : f32
    %145 = vector.broadcast %cst_30 : f32 to vector<1x256xf32>
    %146 = arith.addf %145, %144 : vector<1x256xf32>
    %147 = arith.divf %145, %146 : vector<1x256xf32>
    %148 = vector.extract_strided_slice %136 {offsets = [0, 256], sizes = [1, 256], strides = [1, 1]} : vector<1x768xf32> to vector<1x256xf32>
    %149 = vector.extract_strided_slice %139 {offsets = [0, 256], sizes = [1, 256], strides = [1, 1]} : vector<1x768xf32> to vector<1x256xf32>
    %150 = arith.addf %148, %149 : vector<1x256xf32>
    %151 = arith.negf %150 : vector<1x256xf32>
    %152 = math.exp %151 : vector<1x256xf32>
    %cst_31 = arith.constant 1.000000e+00 : f32
    %153 = vector.broadcast %cst_31 : f32 to vector<1x256xf32>
    %154 = arith.addf %153, %152 : vector<1x256xf32>
    %155 = arith.divf %153, %154 : vector<1x256xf32>
    %156 = vector.extract_strided_slice %136 {offsets = [0, 512], sizes = [1, 256], strides = [1, 1]} : vector<1x768xf32> to vector<1x256xf32>
    %157 = vector.extract_strided_slice %139 {offsets = [0, 512], sizes = [1, 256], strides = [1, 1]} : vector<1x768xf32> to vector<1x256xf32>
    %158 = arith.mulf %147, %157 : vector<1x256xf32>
    %159 = arith.addf %156, %158 : vector<1x256xf32>
    %160 = math.tanh %159 : vector<1x256xf32>
    %cst_32 = arith.constant 1.000000e+00 : f32
    %161 = vector.broadcast %cst_32 : f32 to vector<1x256xf32>
    %162 = arith.subf %161, %155 : vector<1x256xf32>
    %163 = arith.mulf %162, %160 : vector<1x256xf32>
    %164 = arith.mulf %155, %132 : vector<1x256xf32>
    %165 = arith.addf %163, %164 : vector<1x256xf32>
    %166 = arith.index_cast %c4_i32 : i32 to index
    %c0_33 = arith.constant 0 : index
    %167 = vector.load %arg4[%166, %c0_33] : memref<8x256xf32, #tpu.memory_space<vmem>>, vector<1x256xf32>
    tpu.vector_store %arg4[%166, %c0_33], %165 {strides = array<i32>} : memref<8x256xf32, #tpu.memory_space<vmem>>, vector<1x256xf32>,
    %c5_i32 = arith.constant 5 : i32
    %168 = arith.index_cast %c5_i32 : i32 to index
    %c0_34 = arith.constant 0 : index
    %169 = vector.load %arg0[%168, %c0_34] : memref<8x768xf32, #tpu.memory_space<vmem>>, vector<1x768xf32>
    %170 = arith.truncf %165 : vector<1x256xf32> to vector<1x256xbf16>
    %cst_35 = arith.constant dense<0.000000e+00> : vector<1x768xf32>
    %171 = tpu.matmul %170, %0, %cst_35 {dimension_numbers = #tpu.dot_dimension_numbers<[1], [0], [0], [1], [0, 0, 1, 1], [], []>} : vector<1x256xbf16>, vector<256x768xbf16>, vector<1x768xf32> -> vector<1x768xf32>
    %172 = arith.addf %171, %1 : vector<1x768xf32>
    %173 = vector.extract_strided_slice %169 {offsets = [0, 0], sizes = [1, 256], strides = [1, 1]} : vector<1x768xf32> to vector<1x256xf32>
    %174 = vector.extract_strided_slice %172 {offsets = [0, 0], sizes = [1, 256], strides = [1, 1]} : vector<1x768xf32> to vector<1x256xf32>
    %175 = arith.addf %173, %174 : vector<1x256xf32>
    %176 = arith.negf %175 : vector<1x256xf32>
    %177 = math.exp %176 : vector<1x256xf32>
    %cst_36 = arith.constant 1.000000e+00 : f32
    %178 = vector.broadcast %cst_36 : f32 to vector<1x256xf32>
    %179 = arith.addf %178, %177 : vector<1x256xf32>
    %180 = arith.divf %178, %179 : vector<1x256xf32>
    %181 = vector.extract_strided_slice %169 {offsets = [0, 256], sizes = [1, 256], strides = [1, 1]} : vector<1x768xf32> to vector<1x256xf32>
    %182 = vector.extract_strided_slice %172 {offsets = [0, 256], sizes = [1, 256], strides = [1, 1]} : vector<1x768xf32> to vector<1x256xf32>
    %183 = arith.addf %181, %182 : vector<1x256xf32>
    %184 = arith.negf %183 : vector<1x256xf32>
    %185 = math.exp %184 : vector<1x256xf32>
    %cst_37 = arith.constant 1.000000e+00 : f32
    %186 = vector.broadcast %cst_37 : f32 to vector<1x256xf32>
    %187 = arith.addf %186, %185 : vector<1x256xf32>
    %188 = arith.divf %186, %187 : vector<1x256xf32>
    %189 = vector.extract_strided_slice %169 {offsets = [0, 512], sizes = [1, 256], strides = [1, 1]} : vector<1x768xf32> to vector<1x256xf32>
    %190 = vector.extract_strided_slice %172 {offsets = [0, 512], sizes = [1, 256], strides = [1, 1]} : vector<1x768xf32> to vector<1x256xf32>
    %191 = arith.mulf %180, %190 : vector<1x256xf32>
    %192 = arith.addf %189, %191 : vector<1x256xf32>
    %193 = math.tanh %192 : vector<1x256xf32>
    %cst_38 = arith.constant 1.000000e+00 : f32
    %194 = vector.broadcast %cst_38 : f32 to vector<1x256xf32>
    %195 = arith.subf %194, %188 : vector<1x256xf32>
    %196 = arith.mulf %195, %193 : vector<1x256xf32>
    %197 = arith.mulf %188, %165 : vector<1x256xf32>
    %198 = arith.addf %196, %197 : vector<1x256xf32>
    %199 = arith.index_cast %c5_i32 : i32 to index
    %c0_39 = arith.constant 0 : index
    %200 = vector.load %arg4[%199, %c0_39] : memref<8x256xf32, #tpu.memory_space<vmem>>, vector<1x256xf32>
    tpu.vector_store %arg4[%199, %c0_39], %198 {strides = array<i32>} : memref<8x256xf32, #tpu.memory_space<vmem>>, vector<1x256xf32>,
    %c6_i32 = arith.constant 6 : i32
    %201 = arith.index_cast %c6_i32 : i32 to index
    %c0_40 = arith.constant 0 : index
    %202 = vector.load %arg0[%201, %c0_40] : memref<8x768xf32, #tpu.memory_space<vmem>>, vector<1x768xf32>
    %203 = arith.truncf %198 : vector<1x256xf32> to vector<1x256xbf16>
    %cst_41 = arith.constant dense<0.000000e+00> : vector<1x768xf32>
    %204 = tpu.matmul %203, %0, %cst_41 {dimension_numbers = #tpu.dot_dimension_numbers<[1], [0], [0], [1], [0, 0, 1, 1], [], []>} : vector<1x256xbf16>, vector<256x768xbf16>, vector<1x768xf32> -> vector<1x768xf32>
    %205 = arith.addf %204, %1 : vector<1x768xf32>
    %206 = vector.extract_strided_slice %202 {offsets = [0, 0], sizes = [1, 256], strides = [1, 1]} : vector<1x768xf32> to vector<1x256xf32>
    %207 = vector.extract_strided_slice %205 {offsets = [0, 0], sizes = [1, 256], strides = [1, 1]} : vector<1x768xf32> to vector<1x256xf32>
    %208 = arith.addf %206, %207 : vector<1x256xf32>
    %209 = arith.negf %208 : vector<1x256xf32>
    %210 = math.exp %209 : vector<1x256xf32>
    %cst_42 = arith.constant 1.000000e+00 : f32
    %211 = vector.broadcast %cst_42 : f32 to vector<1x256xf32>
    %212 = arith.addf %211, %210 : vector<1x256xf32>
    %213 = arith.divf %211, %212 : vector<1x256xf32>
    %214 = vector.extract_strided_slice %202 {offsets = [0, 256], sizes = [1, 256], strides = [1, 1]} : vector<1x768xf32> to vector<1x256xf32>
    %215 = vector.extract_strided_slice %205 {offsets = [0, 256], sizes = [1, 256], strides = [1, 1]} : vector<1x768xf32> to vector<1x256xf32>
    %216 = arith.addf %214, %215 : vector<1x256xf32>
    %217 = arith.negf %216 : vector<1x256xf32>
    %218 = math.exp %217 : vector<1x256xf32>
    %cst_43 = arith.constant 1.000000e+00 : f32
    %219 = vector.broadcast %cst_43 : f32 to vector<1x256xf32>
    %220 = arith.addf %219, %218 : vector<1x256xf32>
    %221 = arith.divf %219, %220 : vector<1x256xf32>
    %222 = vector.extract_strided_slice %202 {offsets = [0, 512], sizes = [1, 256], strides = [1, 1]} : vector<1x768xf32> to vector<1x256xf32>
    %223 = vector.extract_strided_slice %205 {offsets = [0, 512], sizes = [1, 256], strides = [1, 1]} : vector<1x768xf32> to vector<1x256xf32>
    %224 = arith.mulf %213, %223 : vector<1x256xf32>
    %225 = arith.addf %222, %224 : vector<1x256xf32>
    %226 = math.tanh %225 : vector<1x256xf32>
    %cst_44 = arith.constant 1.000000e+00 : f32
    %227 = vector.broadcast %cst_44 : f32 to vector<1x256xf32>
    %228 = arith.subf %227, %221 : vector<1x256xf32>
    %229 = arith.mulf %228, %226 : vector<1x256xf32>
    %230 = arith.mulf %221, %198 : vector<1x256xf32>
    %231 = arith.addf %229, %230 : vector<1x256xf32>
    %232 = arith.index_cast %c6_i32 : i32 to index
    %c0_45 = arith.constant 0 : index
    %233 = vector.load %arg4[%232, %c0_45] : memref<8x256xf32, #tpu.memory_space<vmem>>, vector<1x256xf32>
    tpu.vector_store %arg4[%232, %c0_45], %231 {strides = array<i32>} : memref<8x256xf32, #tpu.memory_space<vmem>>, vector<1x256xf32>,
    %c7_i32 = arith.constant 7 : i32
    %234 = arith.index_cast %c7_i32 : i32 to index
    %c0_46 = arith.constant 0 : index
    %235 = vector.load %arg0[%234, %c0_46] : memref<8x768xf32, #tpu.memory_space<vmem>>, vector<1x768xf32>
    %236 = arith.truncf %231 : vector<1x256xf32> to vector<1x256xbf16>
    %cst_47 = arith.constant dense<0.000000e+00> : vector<1x768xf32>
    %237 = tpu.matmul %236, %0, %cst_47 {dimension_numbers = #tpu.dot_dimension_numbers<[1], [0], [0], [1], [0, 0, 1, 1], [], []>} : vector<1x256xbf16>, vector<256x768xbf16>, vector<1x768xf32> -> vector<1x768xf32>
    %238 = arith.addf %237, %1 : vector<1x768xf32>
    %239 = vector.extract_strided_slice %235 {offsets = [0, 0], sizes = [1, 256], strides = [1, 1]} : vector<1x768xf32> to vector<1x256xf32>
    %240 = vector.extract_strided_slice %238 {offsets = [0, 0], sizes = [1, 256], strides = [1, 1]} : vector<1x768xf32> to vector<1x256xf32>
    %241 = arith.addf %239, %240 : vector<1x256xf32>
    %242 = arith.negf %241 : vector<1x256xf32>
    %243 = math.exp %242 : vector<1x256xf32>
    %cst_48 = arith.constant 1.000000e+00 : f32
    %244 = vector.broadcast %cst_48 : f32 to vector<1x256xf32>
    %245 = arith.addf %244, %243 : vector<1x256xf32>
    %246 = arith.divf %244, %245 : vector<1x256xf32>
    %247 = vector.extract_strided_slice %235 {offsets = [0, 256], sizes = [1, 256], strides = [1, 1]} : vector<1x768xf32> to vector<1x256xf32>
    %248 = vector.extract_strided_slice %238 {offsets = [0, 256], sizes = [1, 256], strides = [1, 1]} : vector<1x768xf32> to vector<1x256xf32>
    %249 = arith.addf %247, %248 : vector<1x256xf32>
    %250 = arith.negf %249 : vector<1x256xf32>
    %251 = math.exp %250 : vector<1x256xf32>
    %cst_49 = arith.constant 1.000000e+00 : f32
    %252 = vector.broadcast %cst_49 : f32 to vector<1x256xf32>
    %253 = arith.addf %252, %251 : vector<1x256xf32>
    %254 = arith.divf %252, %253 : vector<1x256xf32>
    %255 = vector.extract_strided_slice %235 {offsets = [0, 512], sizes = [1, 256], strides = [1, 1]} : vector<1x768xf32> to vector<1x256xf32>
    %256 = vector.extract_strided_slice %238 {offsets = [0, 512], sizes = [1, 256], strides = [1, 1]} : vector<1x768xf32> to vector<1x256xf32>
    %257 = arith.mulf %246, %256 : vector<1x256xf32>
    %258 = arith.addf %255, %257 : vector<1x256xf32>
    %259 = math.tanh %258 : vector<1x256xf32>
    %cst_50 = arith.constant 1.000000e+00 : f32
    %260 = vector.broadcast %cst_50 : f32 to vector<1x256xf32>
    %261 = arith.subf %260, %254 : vector<1x256xf32>
    %262 = arith.mulf %261, %259 : vector<1x256xf32>
    %263 = arith.mulf %254, %231 : vector<1x256xf32>
    %264 = arith.addf %262, %263 : vector<1x256xf32>
    %265 = arith.index_cast %c7_i32 : i32 to index
    %c0_51 = arith.constant 0 : index
    %266 = vector.load %arg4[%265, %c0_51] : memref<8x256xf32, #tpu.memory_space<vmem>>, vector<1x256xf32>
    tpu.vector_store %arg4[%265, %c0_51], %264 {strides = array<i32>} : memref<8x256xf32, #tpu.memory_space<vmem>>, vector<1x256xf32>,
    %c8_i32 = arith.constant 8 : i32
    return
  }
}

</mosaic_0001>

<llo_original>
// kernel: tpu_custom_call.1
$region0: #{tpu_custom_call.1}
  #allocation0 [shape = 'u32[]', space=smem, size = 0x4, offset = 0x4, fixed_abs, tag = 'smem constant byte address 0x4 - core index']
  #allocation1 [shape = 'u32[72,128]{1,0:T(1,128)}', space=vmem, size = 0x9000, scoped, tag = 'internal scratch']
  %s0 = inlined_call_operand.hbm [shape: f32[8,768], index: 0, kind: input, shape index: {}]
  %s1 = inlined_call_operand.hbm [shape: f32[1,256], index: 1, kind: input, shape index: {}]
  %s2 = inlined_call_operand.hbm [shape: bf16[256,768], index: 2, kind: input, shape index: {}]
  %s3 = inlined_call_operand.hbm [shape: f32[1,768], index: 3, kind: input, shape index: {}]
  %s4 = inlined_call_operand.hbm [shape: f32[8,256], index: 4, kind: output, shape index: {}]
  %s5 = sld [smem:[#allocation0]]
  $region42: #{tpu_custom_call.1} parent=0
    _
  %s7 = ssub.s32 1, %s5
  %s8 = scalar_select 0, %s7, %s5
  $region1: #{tpu_custom_call.1} parent=0
    #allocation2 [shape = 'u8[24576]{0}', space=vmem, size = 0x6000, scoped, tag = 'input window, operand 0, single buffered']
    #allocation3 [shape = 's32[1]{0}', space=sflag, size = 0x4, scoped, tag = 'scoped memory for tpu_custom_call.1']
    #allocation4 [shape = 's32[1]{0}', space=sflag, size = 0x4, scoped, tag = 'scoped memory for tpu_custom_call.1']
    #allocation5 [shape = 'u8[1024]{0}', space=vmem, size = 0x400, scoped, tag = 'input window, operand 1, single buffered']
    #allocation6 [shape = 's32[1]{0}', space=sflag, size = 0x4, scoped, tag = 'scoped memory for tpu_custom_call.1']
    #allocation7 [shape = 'u8[393216]{0}', space=vmem, size = 0x60000, scoped, tag = 'input window, operand 2, single buffered']
    #allocation8 [shape = 'u8[3072]{0}', space=vmem, size = 0xc00, scoped, tag = 'input window, operand 3, single buffered']
    #allocation9 [shape = 's32[1]{0}', space=sflag, size = 0x4, scoped, tag = 'scoped memory for tpu_custom_call.1']
    #allocation10 [shape = 'u8[8192]{0}', space=vmem, size = 0x2000, scoped, tag = 'output window, operand 0, single buffered']
    %9 = vsyncpa [#allocation3], 0
    %10 = vsyncpa [#allocation6], 0
    %11 = vsyncpa [#allocation9], 0
    %12 = vsyncpa [#allocation4], 0
    // Predicated region
    $region2: #{tpu_custom_call.1} parent=1 // pred_check
      _
    $region3: #{tpu_custom_call.1} parent=1 // pred_check_branch
      %14 = sbr.rel (0) target = $region5
    $region4: #{tpu_custom_call.1} parent=1 // pred_region
      %16 = vsyncadd [#allocation3], 0
      %s18 = sshll.u32 %s0, 4
      %s19 = int_to_ptr.hbm [resolvable:$true] %s18
      %s20 = sshll.u32 [#allocation2], 4
      %s21 = int_to_ptr.vmem [resolvable:$true] %s20
      %23 = dma.hbm_to_vmem [thread:$0]  %s19, 768, %s21, [#allocation3]
    $region5: #{tpu_custom_call.1} parent=1 // pred_fallthru
      _
    // Predicated region
    $region6: #{tpu_custom_call.1} parent=1 // pred_check
      _
    $region7: #{tpu_custom_call.1} parent=1 // pred_check_branch
      %25 = sbr.rel (0) target = $region9
    $region8: #{tpu_custom_call.1} parent=1 // pred_region
      %27 = vsyncadd [#allocation6], 0
      %s29 = sshll.u32 %s1, 4
      %s30 = int_to_ptr.hbm [resolvable:$true] %s29
      %s31 = sshll.u32 [#allocation5], 4
      %s32 = int_to_ptr.vmem [resolvable:$true] %s31
      %34 = dma.hbm_to_vmem [thread:$0]  %s30, 32, %s32, [#allocation6]
    $region9: #{tpu_custom_call.1} parent=1 // pred_fallthru
      _
    // Predicated region
    $region10: #{tpu_custom_call.1} parent=1 // pred_check
      _
    $region11: #{tpu_custom_call.1} parent=1 // pred_check_branch
      %36 = sbr.rel (0) target = $region13
    $region12: #{tpu_custom_call.1} parent=1 // pred_region
      %38 = vsyncadd [#allocation6], 0
      %s39 = sshll.u32 %s2, 4
      %s40 = int_to_ptr.hbm [resolvable:$true] %s39
      %s41 = sshll.u32 [#allocation7], 4
      %s42 = int_to_ptr.vmem [resolvable:$true] %s41
      %47 = dma.hbm_to_vmem [thread:$0]  %s40, 12288, %s42, [#allocation6], 384, 384, 24
    $region13: #{tpu_custom_call.1} parent=1 // pred_fallthru
      _
    // Predicated region
    $region14: #{tpu_custom_call.1} parent=1 // pred_check
      _
    $region15: #{tpu_custom_call.1} parent=1 // pred_check_branch
      %49 = sbr.rel (0) target = $region17
    $region16: #{tpu_custom_call.1} parent=1 // pred_region
      %51 = vsyncadd [#allocation9], 0
      %s53 = sshll.u32 %s3, 4
      %s54 = int_to_ptr.hbm [resolvable:$true] %s53
      %s55 = sshll.u32 [#allocation8], 4
      %s56 = int_to_ptr.vmem [resolvable:$true] %s55
      %58 = dma.hbm_to_vmem [thread:$0]  %s54, 96, %s56, [#allocation9]
    $region17: #{tpu_custom_call.1} parent=1 // pred_fallthru
      _
    // Predicated region
    $region18: #{tpu_custom_call.1} parent=1 // pred_check
      _
    $region19: #{tpu_custom_call.1} parent=1 // pred_check_branch
      %60 = sbr.rel (0) target = $region21
    $region20: #{tpu_custom_call.1} parent=1 // pred_region
      %62 = dma.done [#allocation3], 768
    $region21: #{tpu_custom_call.1} parent=1 // pred_fallthru
      _
    // Predicated region
    $region22: #{tpu_custom_call.1} parent=1 // pred_check
      _
    $region23: #{tpu_custom_call.1} parent=1 // pred_check_branch
      %64 = sbr.rel (0) target = $region25
    $region24: #{tpu_custom_call.1} parent=1 // pred_region
      %66 = dma.done [#allocation6], 32
    $region25: #{tpu_custom_call.1} parent=1 // pred_fallthru
      _
    // Predicated region
    $region26: #{tpu_custom_call.1} parent=1 // pred_check
      _
    $region27: #{tpu_custom_call.1} parent=1 // pred_check_branch
      %68 = sbr.rel (0) target = $region29
    $region28: #{tpu_custom_call.1} parent=1 // pred_region
      %70 = dma.done [#allocation6], 12288
    $region29: #{tpu_custom_call.1} parent=1 // pred_fallthru
      _
    // Predicated region
    $region30: #{tpu_custom_call.1} parent=1 // pred_check
      _
    $region31: #{tpu_custom_call.1} parent=1 // pred_check_branch
      %72 = sbr.rel (0) target = $region33
    $region32: #{tpu_custom_call.1} parent=1 // pred_region
      %74 = dma.done [#allocation9], 96
    $region33: #{tpu_custom_call.1} parent=1 // pred_fallthru
      _
    %v75 = vld [vmem:[#allocation7] sm:$0xff]
    %v76 = vld [vmem:[#allocation7 + $0x8] sm:$0xff]
    %v77 = vld [vmem:[#allocation7 + $0x10] sm:$0xff]
    %v78 = vld [vmem:[#allocation7 + $0x18] sm:$0xff]
    %v79 = vld [vmem:[#allocation7 + $0x20] sm:$0xff]
    %v80 = vld [vmem:[#allocation7 + $0x28] sm:$0xff]
    %v81 = vld [vmem:[#allocation7 + $0x30] sm:$0xff]
    %v82 = vld [vmem:[#allocation7 + $0x38] sm:$0xff]
    %v83 = vld [vmem:[#allocation7 + $0x40] sm:$0xff]
    %v84 = vld [vmem:[#allocation7 + $0x48] sm:$0xff]
    %v85 = vld [vmem:[#allocation7 + $0x50] sm:$0xff]
    %v86 = vld [vmem:[#allocation7 + $0x58] sm:$0xff]
    %v87 = vld [vmem:[#allocation7 + $0x60] sm:$0xff]
    %v88 = vld [vmem:[#allocation7 + $0x68] sm:$0xff]
    %v89 = vld [vmem:[#allocation7 + $0x70] sm:$0xff]
    %v90 = vld [vmem:[#allocation7 + $0x78] sm:$0xff]
    %v91 = vld [vmem:[#allocation7 + $0x80] sm:$0xff]
    %v92 = vld [vmem:[#allocation7 + $0x88] sm:$0xff]
    %v93 = vld [vmem:[#allocation7 + $0x90] sm:$0xff]
    %v94 = vld [vmem:[#allocation7 + $0x98] sm:$0xff]
    %v95 = vld [vmem:[#allocation7 + $0xa0] sm:$0xff]
    %v96 = vld [vmem:[#allocation7 + $0xa8] sm:$0xff]
    %v97 = vld [vmem:[#allocation7 + $0xb0] sm:$0xff]
    %v98 = vld [vmem:[#allocation7 + $0xb8] sm:$0xff]
    %v99 = vld [vmem:[#allocation7 + $0xc0] sm:$0xff]
    %v100 = vld [vmem:[#allocation7 + $0xc8] sm:$0xff]
    %v101 = vld [vmem:[#allocation7 + $0xd0] sm:$0xff]
    %v102 = vld [vmem:[#allocation7 + $0xd8] sm:$0xff]
    %v103 = vld [vmem:[#allocation7 + $0xe0] sm:$0xff]
    %v104 = vld [vmem:[#allocation7 + $0xe8] sm:$0xff]
    %v105 = vld [vmem:[#allocation7 + $0xf0] sm:$0xff]
    %v106 = vld [vmem:[#allocation7 + $0xf8] sm:$0xff]
    %v107 = vld [vmem:[#allocation7 + $0x100] sm:$0xff]
    %v108 = vld [vmem:[#allocation7 + $0x108] sm:$0xff]
    %v109 = vld [vmem:[#allocation7 + $0x110] sm:$0xff]
    %v110 = vld [vmem:[#allocation7 + $0x118] sm:$0xff]
    %v111 = vld [vmem:[#allocation7 + $0x120] sm:$0xff]
    %v112 = vld [vmem:[#allocation7 + $0x128] sm:$0xff]
    %v113 = vld [vmem:[#allocation7 + $0x130] sm:$0xff]
    %v114 = vld [vmem:[#allocation7 + $0x138] sm:$0xff]
    %v115 = vld [vmem:[#allocation7 + $0x140] sm:$0xff]
    %v116 = vld [vmem:[#allocation7 + $0x148] sm:$0xff]
    %v117 = vld [vmem:[#allocation7 + $0x150] sm:$0xff]
    %v118 = vld [vmem:[#allocation7 + $0x158] sm:$0xff]
    %v119 = vld [vmem:[#allocation7 + $0x160] sm:$0xff]
    %v120 = vld [vmem:[#allocation7 + $0x168] sm:$0xff]
    %v121 = vld [vmem:[#allocation7 + $0x170] sm:$0xff]
    %v122 = vld [vmem:[#allocation7 + $0x178] sm:$0xff]
    %v123 = vld [vmem:[#allocation7 + $0x180] sm:$0xff]
    %v124 = vld [vmem:[#allocation7 + $0x188] sm:$0xff]
    %v125 = vld [vmem:[#allocation7 + $0x190] sm:$0xff]
    %v126 = vld [vmem:[#allocation7 + $0x198] sm:$0xff]
    %v127 = vld [vmem:[#allocation7 + $0x1a0] sm:$0xff]
    %v128 = vld [vmem:[#allocation7 + $0x1a8] sm:$0xff]
    %v129 = vld [vmem:[#allocation7 + $0x1b0] sm:$0xff]
    %v130 = vld [vmem:[#allocation7 + $0x1b8] sm:$0xff]
    %v131 = vld [vmem:[#allocation7 + $0x1c0] sm:$0xff]
    %v132 = vld [vmem:[#allocation7 + $0x1c8] sm:$0xff]
    %v133 = vld [vmem:[#allocation7 + $0x1d0] sm:$0xff]
    %v134 = vld [vmem:[#allocation7 + $0x1d8] sm:$0xff]
    %v135 = vld [vmem:[#allocation7 + $0x1e0] sm:$0xff]
    %v136 = vld [vmem:[#allocation7 + $0x1e8] sm:$0xff]
    %v137 = vld [vmem:[#allocation7 + $0x1f0] sm:$0xff]
    %v138 = vld [vmem:[#allocation7 + $0x1f8] sm:$0xff]
    %v139 = vld [vmem:[#allocation7 + $0x200] sm:$0xff]
    %v140 = vld [vmem:[#allocation7 + $0x208] sm:$0xff]
    %v141 = vld [vmem:[#allocation7 + $0x210] sm:$0xff]
    %v142 = vld [vmem:[#allocation7 + $0x218] sm:$0xff]
    %v143 = vld [vmem:[#allocation7 + $0x220] sm:$0xff]
    %v144 = vld [vmem:[#allocation7 + $0x228] sm:$0xff]
    %v145 = vld [vmem:[#allocation7 + $0x230] sm:$0xff]
    %v146 = vld [vmem:[#allocation7 + $0x238] sm:$0xff]
    %v147 = vld [vmem:[#allocation7 + $0x240] sm:$0xff]
    %v148 = vld [vmem:[#allocation7 + $0x248] sm:$0xff]
    %v149 = vld [vmem:[#allocation7 + $0x250] sm:$0xff]
    %v150 = vld [vmem:[#allocation7 + $0x258] sm:$0xff]
    %v151 = vld [vmem:[#allocation7 + $0x260] sm:$0xff]
    %v152 = vld [vmem:[#allocation7 + $0x268] sm:$0xff]
    %v153 = vld [vmem:[#allocation7 + $0x270] sm:$0xff]
    %v154 = vld [vmem:[#allocation7 + $0x278] sm:$0xff]
    %v155 = vld [vmem:[#allocation7 + $0x280] sm:$0xff]
    %v156 = vld [vmem:[#allocation7 + $0x288] sm:$0xff]
    %v157 = vld [vmem:[#allocation7 + $0x290] sm:$0xff]
    %v158 = vld [vmem:[#allocation7 + $0x298] sm:$0xff]
    %v159 = vld [vmem:[#allocation7 + $0x2a0] sm:$0xff]
    %v160 = vld [vmem:[#allocation7 + $0x2a8] sm:$0xff]
    %v161 = vld [vmem:[#allocation7 + $0x2b0] sm:$0xff]
    %v162 = vld [vmem:[#allocation7 + $0x2b8] sm:$0xff]
    %v163 = vld [vmem:[#allocation7 + $0x2c0] sm:$0xff]
    %v164 = vld [vmem:[#allocation7 + $0x2c8] sm:$0xff]
    %v165 = vld [vmem:[#allocation7 + $0x2d0] sm:$0xff]
    %v166 = vld [vmem:[#allocation7 + $0x2d8] sm:$0xff]
    %v167 = vld [vmem:[#allocation7 + $0x2e0] sm:$0xff]
    %v168 = vld [vmem:[#allocation7 + $0x2e8] sm:$0xff]
    %v169 = vld [vmem:[#allocation7 + $0x2f0] sm:$0xff]
    %v170 = vld [vmem:[#allocation7 + $0x2f8] sm:$0xff]
    %v171 = vld [vmem:[#allocation8] sm:$0x3f]
    %v172 = vld [vmem:[#allocation5] sm:$0x3]
    %v173 = vld [vmem:[#allocation2] ss:$8 sm:$0xf]
    %v174 = vld [vmem:[#allocation2] ss:$8 sm:$0x30]
    %v175 = vor.u32 %v173, %v174
    %v177 = vperm.slane %v172, 0
    %v178 = vperm.slane %v172, 1
    %v181 = vpack.c.bf16 %v177, %v177
    %v182 = vpack.c.bf16 %v178, %v178
    %v279 = vunpack.c.l.b16 %v75
    %v280 = vunpack.c.h.b16 %v75
    %v281 = vunpack.c.l.b16 %v76
    %v282 = vunpack.c.h.b16 %v76
    %v283 = vunpack.c.l.b16 %v77
    %v284 = vunpack.c.h.b16 %v77
    %v285 = vunpack.c.l.b16 %v78
    %v286 = vunpack.c.h.b16 %v78
    %v287 = vunpack.c.l.b16 %v79
    %v288 = vunpack.c.h.b16 %v79
    %v289 = vunpack.c.l.b16 %v80
    %v290 = vunpack.c.h.b16 %v80
    %v291 = vunpack.c.l.b16 %v81
    %v292 = vunpack.c.h.b16 %v81
    %v293 = vunpack.c.l.b16 %v82
    %v294 = vunpack.c.h.b16 %v82
    %v295 = vunpack.c.l.b16 %v83
    %v296 = vunpack.c.h.b16 %v83
    %v297 = vunpack.c.l.b16 %v84
    %v298 = vunpack.c.h.b16 %v84
    %v299 = vunpack.c.l.b16 %v85
    %v300 = vunpack.c.h.b16 %v85
    %v301 = vunpack.c.l.b16 %v86
    %v302 = vunpack.c.h.b16 %v86
    %v303 = vunpack.c.l.b16 %v87
    %v304 = vunpack.c.h.b16 %v87
    %v305 = vunpack.c.l.b16 %v88
    %v306 = vunpack.c.h.b16 %v88
    %v307 = vunpack.c.l.b16 %v89
    %v308 = vunpack.c.h.b16 %v89
    %v309 = vunpack.c.l.b16 %v90
    %v310 = vunpack.c.h.b16 %v90
    %v311 = vunpack.c.l.b16 %v91
    %v312 = vunpack.c.h.b16 %v91
    %v313 = vunpack.c.l.b16 %v92
    %v314 = vunpack.c.h.b16 %v92
    %v315 = vunpack.c.l.b16 %v93
    %v316 = vunpack.c.h.b16 %v93
    %v317 = vunpack.c.l.b16 %v94
    %v318 = vunpack.c.h.b16 %v94
    %v319 = vunpack.c.l.b16 %v95
    %v320 = vunpack.c.h.b16 %v95
    %v321 = vunpack.c.l.b16 %v96
    %v322 = vunpack.c.h.b16 %v96
    %v323 = vunpack.c.l.b16 %v97
    %v324 = vunpack.c.h.b16 %v97
    %v325 = vunpack.c.l.b16 %v98
    %v326 = vunpack.c.h.b16 %v98
    %v327 = vunpack.c.l.b16 %v99
    %v328 = vunpack.c.h.b16 %v99
    %v329 = vunpack.c.l.b16 %v100
    %v330 = vunpack.c.h.b16 %v100
    %v331 = vunpack.c.l.b16 %v101
    %v332 = vunpack.c.h.b16 %v101
    %v333 = vunpack.c.l.b16 %v102
    %v334 = vunpack.c.h.b16 %v102
    %v335 = vunpack.c.l.b16 %v103
    %v336 = vunpack.c.h.b16 %v103
    %v337 = vunpack.c.l.b16 %v104
    %v338 = vunpack.c.h.b16 %v104
    %v339 = vunpack.c.l.b16 %v105
    %v340 = vunpack.c.h.b16 %v105
    %v341 = vunpack.c.l.b16 %v106
    %v342 = vunpack.c.h.b16 %v106
    %v343 = vunpack.c.l.b16 %v107
    %v344 = vunpack.c.h.b16 %v107
    %v345 = vunpack.c.l.b16 %v108
    %v346 = vunpack.c.h.b16 %v108
    %v347 = vunpack.c.l.b16 %v109
    %v348 = vunpack.c.h.b16 %v109
    %v349 = vunpack.c.l.b16 %v110
    %v350 = vunpack.c.h.b16 %v110
    %v351 = vunpack.c.l.b16 %v111
    %v352 = vunpack.c.h.b16 %v111
    %v353 = vunpack.c.l.b16 %v112
    %v354 = vunpack.c.h.b16 %v112
    %v355 = vunpack.c.l.b16 %v113
    %v356 = vunpack.c.h.b16 %v113
    %v357 = vunpack.c.l.b16 %v114
    %v358 = vunpack.c.h.b16 %v114
    %v359 = vunpack.c.l.b16 %v115
    %v360 = vunpack.c.h.b16 %v115
    %v361 = vunpack.c.l.b16 %v116
    %v362 = vunpack.c.h.b16 %v116
    %v363 = vunpack.c.l.b16 %v117
    %v364 = vunpack.c.h.b16 %v117
    %v365 = vunpack.c.l.b16 %v118
    %v366 = vunpack.c.h.b16 %v118
    %v367 = vunpack.c.l.b16 %v119
    %v368 = vunpack.c.h.b16 %v119
    %v369 = vunpack.c.l.b16 %v120
    %v370 = vunpack.c.h.b16 %v120
    %v371 = vunpack.c.l.b16 %v121
    %v372 = vunpack.c.h.b16 %v121
    %v373 = vunpack.c.l.b16 %v122
    %v374 = vunpack.c.h.b16 %v122
    %v375 = vunpack.c.l.b16 %v123
    %v376 = vunpack.c.h.b16 %v123
    %v377 = vunpack.c.l.b16 %v124
    %v378 = vunpack.c.h.b16 %v124
    %v379 = vunpack.c.l.b16 %v125
    %v380 = vunpack.c.h.b16 %v125
    %v381 = vunpack.c.l.b16 %v126
    %v382 = vunpack.c.h.b16 %v126
    %v383 = vunpack.c.l.b16 %v127
    %v384 = vunpack.c.h.b16 %v127
    %v385 = vunpack.c.l.b16 %v128
    %v386 = vunpack.c.h.b16 %v128
    %v387 = vunpack.c.l.b16 %v129
    %v388 = vunpack.c.h.b16 %v129
    %v389 = vunpack.c.l.b16 %v130
    %v390 = vunpack.c.h.b16 %v130
    %v391 = vunpack.c.l.b16 %v131
    %v392 = vunpack.c.h.b16 %v131
    %v393 = vunpack.c.l.b16 %v132
    %v394 = vunpack.c.h.b16 %v132
    %v395 = vunpack.c.l.b16 %v133
    %v396 = vunpack.c.h.b16 %v133
    %v397 = vunpack.c.l.b16 %v134
    %v398 = vunpack.c.h.b16 %v134
    %v399 = vunpack.c.l.b16 %v135
    %v400 = vunpack.c.h.b16 %v135
    %v401 = vunpack.c.l.b16 %v136
    %v402 = vunpack.c.h.b16 %v136
    %v403 = vunpack.c.l.b16 %v137
    %v404 = vunpack.c.h.b16 %v137
    %v405 = vunpack.c.l.b16 %v138
    %v406 = vunpack.c.h.b16 %v138
    %v407 = vunpack.c.l.b16 %v139
    %v408 = vunpack.c.h.b16 %v139
    %v409 = vunpack.c.l.b16 %v140
    %v410 = vunpack.c.h.b16 %v140
    %v411 = vunpack.c.l.b16 %v141
    %v412 = vunpack.c.h.b16 %v141
    %v413 = vunpack.c.l.b16 %v142
    %v414 = vunpack.c.h.b16 %v142
    %v415 = vunpack.c.l.b16 %v143
    %v416 = vunpack.c.h.b16 %v143
    %v417 = vunpack.c.l.b16 %v144
    %v418 = vunpack.c.h.b16 %v144
    %v419 = vunpack.c.l.b16 %v145
    %v420 = vunpack.c.h.b16 %v145
    %v421 = vunpack.c.l.b16 %v146
    %v422 = vunpack.c.h.b16 %v146
    %v423 = vunpack.c.l.b16 %v147
    %v424 = vunpack.c.h.b16 %v147
    %v425 = vunpack.c.l.b16 %v148
    %v426 = vunpack.c.h.b16 %v148
    %v427 = vunpack.c.l.b16 %v149
    %v428 = vunpack.c.h.b16 %v149
    %v429 = vunpack.c.l.b16 %v150
    %v430 = vunpack.c.h.b16 %v150
    %v431 = vunpack.c.l.b16 %v151
    %v432 = vunpack.c.h.b16 %v151
    %v433 = vunpack.c.l.b16 %v152
    %v434 = vunpack.c.h.b16 %v152
    %v435 = vunpack.c.l.b16 %v153
    %v436 = vunpack.c.h.b16 %v153
    %v437 = vunpack.c.l.b16 %v154
    %v438 = vunpack.c.h.b16 %v154
    %v439 = vunpack.c.l.b16 %v155
    %v440 = vunpack.c.h.b16 %v155
    %v441 = vunpack.c.l.b16 %v156
    %v442 = vunpack.c.h.b16 %v156
    %v443 = vunpack.c.l.b16 %v157
    %v444 = vunpack.c.h.b16 %v157
    %v445 = vunpack.c.l.b16 %v158
    %v446 = vunpack.c.h.b16 %v158
    %v447 = vunpack.c.l.b16 %v159
    %v448 = vunpack.c.h.b16 %v159
    %v449 = vunpack.c.l.b16 %v160
    %v450 = vunpack.c.h.b16 %v160
    %v451 = vunpack.c.l.b16 %v161
    %v452 = vunpack.c.h.b16 %v161
    %v453 = vunpack.c.l.b16 %v162
    %v454 = vunpack.c.h.b16 %v162
    %v455 = vunpack.c.l.b16 %v163
    %v456 = vunpack.c.h.b16 %v163
    %v457 = vunpack.c.l.b16 %v164
    %v458 = vunpack.c.h.b16 %v164
    %v459 = vunpack.c.l.b16 %v165
    %v460 = vunpack.c.h.b16 %v165
    %v461 = vunpack.c.l.b16 %v166
    %v462 = vunpack.c.h.b16 %v166
    %v463 = vunpack.c.l.b16 %v167
    %v464 = vunpack.c.h.b16 %v167
    %v465 = vunpack.c.l.b16 %v168
    %v466 = vunpack.c.h.b16 %v168
    %v467 = vunpack.c.l.b16 %v169
    %v468 = vunpack.c.h.b16 %v169
    %v469 = vunpack.c.l.b16 %v170
    %v470 = vunpack.c.h.b16 %v170
    %v471 = vpack.c.b16 %v285, %v279
    %v472 = vpack.c.b16 %v286, %v280
    %v473 = vpack.c.b16 %v287, %v281
    %v474 = vpack.c.b16 %v288, %v282
    %v475 = vpack.c.b16 %v289, %v283
    %v476 = vpack.c.b16 %v290, %v284
    %v477 = vpack.c.b16 %v297, %v291
    %v478 = vpack.c.b16 %v298, %v292
    %v479 = vpack.c.b16 %v299, %v293
    %v480 = vpack.c.b16 %v300, %v294
    %v481 = vpack.c.b16 %v301, %v295
    %v482 = vpack.c.b16 %v302, %v296
    %v483 = vpack.c.b16 %v309, %v303
    %v484 = vpack.c.b16 %v310, %v304
    %v485 = vpack.c.b16 %v311, %v305
    %v486 = vpack.c.b16 %v312, %v306
    %v487 = vpack.c.b16 %v313, %v307
    %v488 = vpack.c.b16 %v314, %v308
    %v489 = vpack.c.b16 %v321, %v315
    %v490 = vpack.c.b16 %v322, %v316
    %v491 = vpack.c.b16 %v323, %v317
    %v492 = vpack.c.b16 %v324, %v318
    %v493 = vpack.c.b16 %v325, %v319
    %v494 = vpack.c.b16 %v326, %v320
    %v495 = vpack.c.b16 %v333, %v327
    %v496 = vpack.c.b16 %v334, %v328
    %v497 = vpack.c.b16 %v335, %v329
    %v498 = vpack.c.b16 %v336, %v330
    %v499 = vpack.c.b16 %v337, %v331
    %v500 = vpack.c.b16 %v338, %v332
    %v501 = vpack.c.b16 %v345, %v339
    %v502 = vpack.c.b16 %v346, %v340
    %v503 = vpack.c.b16 %v347, %v341
    %v504 = vpack.c.b16 %v348, %v342
    %v505 = vpack.c.b16 %v349, %v343
    %v506 = vpack.c.b16 %v350, %v344
    %v507 = vpack.c.b16 %v357, %v351
    %v508 = vpack.c.b16 %v358, %v352
    %v509 = vpack.c.b16 %v359, %v353
    %v510 = vpack.c.b16 %v360, %v354
    %v511 = vpack.c.b16 %v361, %v355
    %v512 = vpack.c.b16 %v362, %v356
    %v513 = vpack.c.b16 %v369, %v363
    %v514 = vpack.c.b16 %v370, %v364
    %v515 = vpack.c.b16 %v371, %v365
    %v516 = vpack.c.b16 %v372, %v366
    %v517 = vpack.c.b16 %v373, %v367
    %v518 = vpack.c.b16 %v374, %v368
    %v519 = vpack.c.b16 %v381, %v375
    %v520 = vpack.c.b16 %v382, %v376
    %v521 = vpack.c.b16 %v383, %v377
    %v522 = vpack.c.b16 %v384, %v378
    %v523 = vpack.c.b16 %v385, %v379
    %v524 = vpack.c.b16 %v386, %v380
    %v525 = vpack.c.b16 %v393, %v387
    %v526 = vpack.c.b16 %v394, %v388
    %v527 = vpack.c.b16 %v395, %v389
    %v528 = vpack.c.b16 %v396, %v390
    %v529 = vpack.c.b16 %v397, %v391
    %v530 = vpack.c.b16 %v398, %v392
    %v531 = vpack.c.b16 %v405, %v399
    %v532 = vpack.c.b16 %v406, %v400
    %v533 = vpack.c.b16 %v407, %v401
    %v534 = vpack.c.b16 %v408, %v402
    %v535 = vpack.c.b16 %v409, %v403
    %v536 = vpack.c.b16 %v410, %v404
    %v537 = vpack.c.b16 %v417, %v411
    %v538 = vpack.c.b16 %v418, %v412
    %v539 = vpack.c.b16 %v419, %v413
    %v540 = vpack.c.b16 %v420, %v414
    %v541 = vpack.c.b16 %v421, %v415
    %v542 = vpack.c.b16 %v422, %v416
    %v543 = vpack.c.b16 %v429, %v423
    %v544 = vpack.c.b16 %v430, %v424
    %v545 = vpack.c.b16 %v431, %v425
    %v546 = vpack.c.b16 %v432, %v426
    %v547 = vpack.c.b16 %v433, %v427
    %v548 = vpack.c.b16 %v434, %v428
    %v549 = vpack.c.b16 %v441, %v435
    %v550 = vpack.c.b16 %v442, %v436
    %v551 = vpack.c.b16 %v443, %v437
    %v552 = vpack.c.b16 %v444, %v438
    %v553 = vpack.c.b16 %v445, %v439
    %v554 = vpack.c.b16 %v446, %v440
    %v555 = vpack.c.b16 %v453, %v447
    %v556 = vpack.c.b16 %v454, %v448
    %v557 = vpack.c.b16 %v455, %v449
    %v558 = vpack.c.b16 %v456, %v450
    %v559 = vpack.c.b16 %v457, %v451
    %v560 = vpack.c.b16 %v458, %v452
    %v561 = vpack.c.b16 %v465, %v459
    %v562 = vpack.c.b16 %v466, %v460
    %v563 = vpack.c.b16 %v467, %v461
    %v564 = vpack.c.b16 %v468, %v462
    %v565 = vpack.c.b16 %v469, %v463
    %v566 = vpack.c.b16 %v470, %v464
    %v664 = vperm.slane %v171, 0
    %v665 = vperm.slane %v171, 1
    %v666 = vperm.slane %v171, 2
    %v667 = vperm.slane %v171, 3
    %v668 = vperm.slane %v171, 4
    %v669 = vperm.slane %v171, 5
    %676 = vmatpush.bf16.msra.mxu0 %v513
    %677 = vmatpush.bf16.msra.mxu0 %v507
    %678 = vmatpush.bf16.msra.mxu0 %v501
    %679 = vmatpush.bf16.msra.mxu0 %v495
    %680 = vmatpush.bf16.msra.mxu0 %v489
    %681 = vmatpush.bf16.msra.mxu0 %v483
    %682 = vmatpush.bf16.msra.mxu0 %v477
    %683 = vmatpush.bf16.msra.mxu0 %v471
    %684 = vmatmul.bf16.gmra.mxu0 %v181
    %v685 = vpop.f32.mrf.mxu0
    %v686 = vadd.f32 %v664, %v685
    %v687 = vpop.f32.mrf.mxu0
    %688 = vdwg.mxu0
    %689 = vmatpush.bf16.msra.mxu0 %v561
    %690 = vmatpush.bf16.msra.mxu0 %v555
    %691 = vmatpush.bf16.msra.mxu0 %v549
    %692 = vmatpush.bf16.msra.mxu0 %v543
    %693 = vmatpush.bf16.msra.mxu0 %v537
    %694 = vmatpush.bf16.msra.mxu0 %v531
    %695 = vmatpush.bf16.msra.mxu0 %v525
    %696 = vmatpush.bf16.msra.mxu0 %v519
    %697 = vmatmul.bf16.gmra.mxu0 %v182
    %v698 = vpop.f32.mrf.mxu0
    %v699 = vadd.f32 %v686, %v698
    %v700 = vpop.f32.mrf.mxu0
    %701 = vdwg.mxu0
    %702 = vmatpush.bf16.msra.mxu0 %v514
    %703 = vmatpush.bf16.msra.mxu0 %v508
    %704 = vmatpush.bf16.msra.mxu0 %v502
    %705 = vmatpush.bf16.msra.mxu0 %v496
    %706 = vmatpush.bf16.msra.mxu0 %v490
    %707 = vmatpush.bf16.msra.mxu0 %v484
    %708 = vmatpush.bf16.msra.mxu0 %v478
    %709 = vmatpush.bf16.msra.mxu0 %v472
    %710 = vmatmul.bf16.gmra.mxu0 %v181
    %v711 = vpop.f32.mrf.mxu0
    %v712 = vadd.f32 %v665, %v711
    %v713 = vpop.f32.mrf.mxu0
    %714 = vdwg.mxu0
    %715 = vmatpush.bf16.msra.mxu0 %v562
    %716 = vmatpush.bf16.msra.mxu0 %v556
    %717 = vmatpush.bf16.msra.mxu0 %v550
    %718 = vmatpush.bf16.msra.mxu0 %v544
    %719 = vmatpush.bf16.msra.mxu0 %v538
    %720 = vmatpush.bf16.msra.mxu0 %v532
    %721 = vmatpush.bf16.msra.mxu0 %v526
    %722 = vmatpush.bf16.msra.mxu0 %v520
    %723 = vmatmul.bf16.gmra.mxu0 %v182
    %v724 = vpop.f32.mrf.mxu0
    %v725 = vadd.f32 %v712, %v724
    %v726 = vpop.f32.mrf.mxu0
    %727 = vdwg.mxu0
    %728 = vmatpush.bf16.msra.mxu0 %v515
    %729 = vmatpush.bf16.msra.mxu0 %v509
    %730 = vmatpush.bf16.msra.mxu0 %v503
    %731 = vmatpush.bf16.msra.mxu0 %v497
    %732 = vmatpush.bf16.msra.mxu0 %v491
    %733 = vmatpush.bf16.msra.mxu0 %v485
    %734 = vmatpush.bf16.msra.mxu0 %v479
    %735 = vmatpush.bf16.msra.mxu0 %v473
    %736 = vmatmul.bf16.gmra.mxu0 %v181
    %v737 = vpop.f32.mrf.mxu0
    %v738 = vadd.f32 %v666, %v737
    %v739 = vpop.f32.mrf.mxu0
    %740 = vdwg.mxu0
    %741 = vmatpush.bf16.msra.mxu0 %v563
    %742 = vmatpush.bf16.msra.mxu0 %v557
    %743 = vmatpush.bf16.msra.mxu0 %v551
    %744 = vmatpush.bf16.msra.mxu0 %v545
    %745 = vmatpush.bf16.msra.mxu0 %v539
    %746 = vmatpush.bf16.msra.mxu0 %v533
    %747 = vmatpush.bf16.msra.mxu0 %v527
    %748 = vmatpush.bf16.msra.mxu0 %v521
    %749 = vmatmul.bf16.gmra.mxu0 %v182
    %v750 = vpop.f32.mrf.mxu0
    %v751 = vadd.f32 %v738, %v750
    %v752 = vpop.f32.mrf.mxu0
    %753 = vdwg.mxu0
    %754 = vmatpush.bf16.msra.mxu0 %v516
    %755 = vmatpush.bf16.msra.mxu0 %v510
    %756 = vmatpush.bf16.msra.mxu0 %v504
    %757 = vmatpush.bf16.msra.mxu0 %v498
    %758 = vmatpush.bf16.msra.mxu0 %v492
    %759 = vmatpush.bf16.msra.mxu0 %v486
    %760 = vmatpush.bf16.msra.mxu0 %v480
    %761 = vmatpush.bf16.msra.mxu0 %v474
    %762 = vmatmul.bf16.gmra.mxu0 %v181
    %v763 = vpop.f32.mrf.mxu0
    %v764 = vadd.f32 %v667, %v763
    %v765 = vpop.f32.mrf.mxu0
    %766 = vdwg.mxu0
    %767 = vmatpush.bf16.msra.mxu0 %v564
    %768 = vmatpush.bf16.msra.mxu0 %v558
    %769 = vmatpush.bf16.msra.mxu0 %v552
    %770 = vmatpush.bf16.msra.mxu0 %v546
    %771 = vmatpush.bf16.msra.mxu0 %v540
    %772 = vmatpush.bf16.msra.mxu0 %v534
    %773 = vmatpush.bf16.msra.mxu0 %v528
    %774 = vmatpush.bf16.msra.mxu0 %v522
    %775 = vmatmul.bf16.gmra.mxu0 %v182
    %v776 = vpop.f32.mrf.mxu0
    %v777 = vadd.f32 %v764, %v776
    %v778 = vpop.f32.mrf.mxu0
    %779 = vdwg.mxu0
    %780 = vmatpush.bf16.msra.mxu0 %v517
    %781 = vmatpush.bf16.msra.mxu0 %v511
    %782 = vmatpush.bf16.msra.mxu0 %v505
    %783 = vmatpush.bf16.msra.mxu0 %v499
    %784 = vmatpush.bf16.msra.mxu0 %v493
    %785 = vmatpush.bf16.msra.mxu0 %v487
    %786 = vmatpush.bf16.msra.mxu0 %v481
    %787 = vmatpush.bf16.msra.mxu0 %v475
    %788 = vmatmul.bf16.gmra.mxu0 %v181
    %v789 = vpop.f32.mrf.mxu0
    %v790 = vadd.f32 %v668, %v789
    %v791 = vpop.f32.mrf.mxu0
    %792 = vdwg.mxu0
    %793 = vmatpush.bf16.msra.mxu0 %v565
    %794 = vmatpush.bf16.msra.mxu0 %v559
    %795 = vmatpush.bf16.msra.mxu0 %v553
    %796 = vmatpush.bf16.msra.mxu0 %v547
    %797 = vmatpush.bf16.msra.mxu0 %v541
    %798 = vmatpush.bf16.msra.mxu0 %v535
    %799 = vmatpush.bf16.msra.mxu0 %v529
    %800 = vmatpush.bf16.msra.mxu0 %v523
    %801 = vmatmul.bf16.gmra.mxu0 %v182
    %v802 = vpop.f32.mrf.mxu0
    %v803 = vadd.f32 %v790, %v802
    %v804 = vpop.f32.mrf.mxu0
    %805 = vdwg.mxu0
    %806 = vmatpush.bf16.msra.mxu0 %v518
    %807 = vmatpush.bf16.msra.mxu0 %v512
    %808 = vmatpush.bf16.msra.mxu0 %v506
    %809 = vmatpush.bf16.msra.mxu0 %v500
    %810 = vmatpush.bf16.msra.mxu0 %v494
    %811 = vmatpush.bf16.msra.mxu0 %v488
    %812 = vmatpush.bf16.msra.mxu0 %v482
    %813 = vmatpush.bf16.msra.mxu0 %v476
    %814 = vmatmul.bf16.gmra.mxu0 %v181
    %v815 = vpop.f32.mrf.mxu0
    %v816 = vadd.f32 %v669, %v815
    %v817 = vpop.f32.mrf.mxu0
    %818 = vdwg.mxu0
    %819 = vmatpush.bf16.msra.mxu0 %v566
    %820 = vmatpush.bf16.msra.mxu0 %v560
    %821 = vmatpush.bf16.msra.mxu0 %v554
    %822 = vmatpush.bf16.msra.mxu0 %v548
    %823 = vmatpush.bf16.msra.mxu0 %v542
    %824 = vmatpush.bf16.msra.mxu0 %v536
    %825 = vmatpush.bf16.msra.mxu0 %v530
    %826 = vmatpush.bf16.msra.mxu0 %v524
    %827 = vmatmul.bf16.gmra.mxu0 %v182
    %v828 = vpop.f32.mrf.mxu0
    %v829 = vadd.f32 %v816, %v828
    %v830 = vpop.f32.mrf.mxu0
    %831 = vdwg.mxu0
    %v834 = vrot.slane %v725, 7
    %vm835 = vcmask 1040384
    %v836 = vsel %vm835, %v699, %v834
    %v838 = vadd.f32 %v175, %v836
    %v839 = vxor.u32 %v838, 2147483648
    %v840 = vmul.f32 %v839, 1.442695
    %v841 = vpow.pop %v840
    %v842 = vadd.f32 %v841, 1.0
    %v843 = vrcp.pop %v842
    %v844 = vmul.f32 %v842, %v843
    %v845 = vsub.f32 1.0, %v844
    %v846 = vmul.f32 %v843, %v845
    %v847 = vadd.f32 %v843, %v846
    %vm848 = vweird.f32 %v842
    %vm849 = vweird.f32 %v843
    %vm850 = vmor %vm848, %vm849
    %v851 = vsel %vm850, %v843, %v847
    %v852 = vand.u32 2147483647, %v842
    %vm853 = vcmp.eq.f32.partialorder %v852, 8.507059e+37
    %v854 = vand.u32 %v842, 2147483648
    %v855 = vor.u32 1.1754944e-38, %v854
    %v856 = vsel %vm853, %v855, %v851
    %v857 = vmul.f32 1.0, %v856
    %v859 = vrot.slane %v175, 2
    %v863 = vrot.slane %v777, 7
    %v864 = vsel %vm835, %v751, %v863
    %v866 = vadd.f32 %v859, %v864
    %v867 = vxor.u32 %v866, 2147483648
    %v868 = vmul.f32 %v867, 1.442695
    %v869 = vpow.pop %v868
    %v870 = vadd.f32 %v869, 1.0
    %v871 = vrcp.pop %v870
    %v872 = vmul.f32 %v870, %v871
    %v873 = vsub.f32 1.0, %v872
    %v874 = vmul.f32 %v871, %v873
    %v875 = vadd.f32 %v871, %v874
    %vm876 = vweird.f32 %v870
    %vm877 = vweird.f32 %v871
    %vm878 = vmor %vm876, %vm877
    %v879 = vsel %vm878, %v871, %v875
    %v880 = vand.u32 2147483647, %v870
    %vm881 = vcmp.eq.f32.partialorder %v880, 8.507059e+37
    %v882 = vand.u32 %v870, 2147483648
    %v883 = vor.u32 1.1754944e-38, %v882
    %v884 = vsel %vm881, %v883, %v879
    %v885 = vmul.f32 1.0, %v884
    %v888 = vrot.slane %v829, 7
    %v889 = vsel %vm835, %v803, %v888
    %v891 = vmul.f32 %v857, %v889
    %v892 = vrot.slane %v175, 4
    %v894 = vadd.f32 %v892, %v891
    %v895 = vtanh.pop %v894
    %v896 = vsub.f32 1.0, %v885
    %v897 = vmul.f32 %v896, %v895
    %v898 = vmul.f32 %v885, %v172
    %v899 = vadd.f32 %v897, %v898
    %v900 = vlaneseq
    %vm901 = vcmp.ge.s32.totalorder %v900, 0
    %vm902 = vcmp.lt.s32.totalorder %v900, 256
    %vm903 = vmand %vm901, %vm902
    %904 = vst.msk [vmem:[#allocation10] ss:$8 sm:$0x3] %vm903, %v899
    %905 = vst.msk [vmem:[#allocation10] ss:$8 sm:$0x0] %vm903, %v899
    %s906 = scalar_lea.vmem [#allocation2], 1
    %v907 = vld [vmem:[%s906] ss:$8 sm:$0xf]
    %v908 = vld [vmem:[%s906] ss:$8 sm:$0x30]
    %v909 = vor.u32 %v907, %v908
    %v911 = vperm.slane %v899, 0
    %v912 = vperm.slane %v899, 1
    %v915 = vpack.c.bf16 %v911, %v911
    %v916 = vpack.c.bf16 %v912, %v912
    %917 = vmatpush.bf16.msra.mxu0 %v513
    %918 = vmatpush.bf16.msra.mxu0 %v507
    %919 = vmatpush.bf16.msra.mxu0 %v501
    %920 = vmatpush.bf16.msra.mxu0 %v495
    %921 = vmatpush.bf16.msra.mxu0 %v489
    %922 = vmatpush.bf16.msra.mxu0 %v483
    %923 = vmatpush.bf16.msra.mxu0 %v477
    %924 = vmatpush.bf16.msra.mxu0 %v471
    %925 = vmatmul.bf16.gmra.mxu0 %v915
    %v926 = vpop.f32.mrf.mxu0
    %v927 = vadd.f32 %v664, %v926
    %v928 = vpop.f32.mrf.mxu0
    %929 = vdwg.mxu0
    %930 = vmatpush.bf16.msra.mxu0 %v561
    %931 = vmatpush.bf16.msra.mxu0 %v555
    %932 = vmatpush.bf16.msra.mxu0 %v549
    %933 = vmatpush.bf16.msra.mxu0 %v543
    %934 = vmatpush.bf16.msra.mxu0 %v537
    %935 = vmatpush.bf16.msra.mxu0 %v531
    %936 = vmatpush.bf16.msra.mxu0 %v525
    %937 = vmatpush.bf16.msra.mxu0 %v519
    %938 = vmatmul.bf16.gmra.mxu0 %v916
    %v939 = vpop.f32.mrf.mxu0
    %v940 = vadd.f32 %v927, %v939
    %v941 = vpop.f32.mrf.mxu0
    %942 = vdwg.mxu0
    %943 = vmatpush.bf16.msra.mxu0 %v514
    %944 = vmatpush.bf16.msra.mxu0 %v508
    %945 = vmatpush.bf16.msra.mxu0 %v502
    %946 = vmatpush.bf16.msra.mxu0 %v496
    %947 = vmatpush.bf16.msra.mxu0 %v490
    %948 = vmatpush.bf16.msra.mxu0 %v484
    %949 = vmatpush.bf16.msra.mxu0 %v478
    %950 = vmatpush.bf16.msra.mxu0 %v472
    %951 = vmatmul.bf16.gmra.mxu0 %v915
    %v952 = vpop.f32.mrf.mxu0
    %v953 = vadd.f32 %v665, %v952
    %v954 = vpop.f32.mrf.mxu0
    %955 = vdwg.mxu0
    %956 = vmatpush.bf16.msra.mxu0 %v562
    %957 = vmatpush.bf16.msra.mxu0 %v556
    %958 = vmatpush.bf16.msra.mxu0 %v550
    %959 = vmatpush.bf16.msra.mxu0 %v544
    %960 = vmatpush.bf16.msra.mxu0 %v538
    %961 = vmatpush.bf16.msra.mxu0 %v532
    %962 = vmatpush.bf16.msra.mxu0 %v526
    %963 = vmatpush.bf16.msra.mxu0 %v520
    %964 = vmatmul.bf16.gmra.mxu0 %v916
    %v965 = vpop.f32.mrf.mxu0
    %v966 = vadd.f32 %v953, %v965
    %v967 = vpop.f32.mrf.mxu0
    %968 = vdwg.mxu0
    %969 = vmatpush.bf16.msra.mxu0 %v515
    %970 = vmatpush.bf16.msra.mxu0 %v509
    %971 = vmatpush.bf16.msra.mxu0 %v503
    %972 = vmatpush.bf16.msra.mxu0 %v497
    %973 = vmatpush.bf16.msra.mxu0 %v491
    %974 = vmatpush.bf16.msra.mxu0 %v485
    %975 = vmatpush.bf16.msra.mxu0 %v479
    %976 = vmatpush.bf16.msra.mxu0 %v473
    %977 = vmatmul.bf16.gmra.mxu0 %v915
    %v978 = vpop.f32.mrf.mxu0
    %v979 = vadd.f32 %v666, %v978
    %v980 = vpop.f32.mrf.mxu0
    %981 = vdwg.mxu0
    %982 = vmatpush.bf16.msra.mxu0 %v563
    %983 = vmatpush.bf16.msra.mxu0 %v557
    %984 = vmatpush.bf16.msra.mxu0 %v551
    %985 = vmatpush.bf16.msra.mxu0 %v545
    %986 = vmatpush.bf16.msra.mxu0 %v539
    %987 = vmatpush.bf16.msra.mxu0 %v533
    %988 = vmatpush.bf16.msra.mxu0 %v527
    %989 = vmatpush.bf16.msra.mxu0 %v521
    %990 = vmatmul.bf16.gmra.mxu0 %v916
    %v991 = vpop.f32.mrf.mxu0
    %v992 = vadd.f32 %v979, %v991
    %v993 = vpop.f32.mrf.mxu0
    %994 = vdwg.mxu0
    %995 = vmatpush.bf16.msra.mxu0 %v516
    %996 = vmatpush.bf16.msra.mxu0 %v510
    %997 = vmatpush.bf16.msra.mxu0 %v504
    %998 = vmatpush.bf16.msra.mxu0 %v498
    %999 = vmatpush.bf16.msra.mxu0 %v492
    %1000 = vmatpush.bf16.msra.mxu0 %v486
    %1001 = vmatpush.bf16.msra.mxu0 %v480
    %1002 = vmatpush.bf16.msra.mxu0 %v474
    %1003 = vmatmul.bf16.gmra.mxu0 %v915
    %v1004 = vpop.f32.mrf.mxu0
    %v1005 = vadd.f32 %v667, %v1004
    %v1006 = vpop.f32.mrf.mxu0
    %1007 = vdwg.mxu0
    %1008 = vmatpush.bf16.msra.mxu0 %v564
    %1009 = vmatpush.bf16.msra.mxu0 %v558
    %1010 = vmatpush.bf16.msra.mxu0 %v552
    %1011 = vmatpush.bf16.msra.mxu0 %v546
    %1012 = vmatpush.bf16.msra.mxu0 %v540
    %1013 = vmatpush.bf16.msra.mxu0 %v534
    %1014 = vmatpush.bf16.msra.mxu0 %v528
    %1015 = vmatpush.bf16.msra.mxu0 %v522
    %1016 = vmatmul.bf16.gmra.mxu0 %v916
    %v1017 = vpop.f32.mrf.mxu0
    %v1018 = vadd.f32 %v1005, %v1017
    %v1019 = vpop.f32.mrf.mxu0
    %1020 = vdwg.mxu0
    %1021 = vmatpush.bf16.msra.mxu0 %v517
    %1022 = vmatpush.bf16.msra.mxu0 %v511
    %1023 = vmatpush.bf16.msra.mxu0 %v505
    %1024 = vmatpush.bf16.msra.mxu0 %v499
    %1025 = vmatpush.bf16.msra.mxu0 %v493
    %1026 = vmatpush.bf16.msra.mxu0 %v487
    %1027 = vmatpush.bf16.msra.mxu0 %v481
    %1028 = vmatpush.bf16.msra.mxu0 %v475
    %1029 = vmatmul.bf16.gmra.mxu0 %v915
    %v1030 = vpop.f32.mrf.mxu0
    %v1031 = vadd.f32 %v668, %v1030
    %v1032 = vpop.f32.mrf.mxu0
    %1033 = vdwg.mxu0
    %1034 = vmatpush.bf16.msra.mxu0 %v565
    %1035 = vmatpush.bf16.msra.mxu0 %v559
    %1036 = vmatpush.bf16.msra.mxu0 %v553
    %1037 = vmatpush.bf16.msra.mxu0 %v547
    %1038 = vmatpush.bf16.msra.mxu0 %v541
    %1039 = vmatpush.bf16.msra.mxu0 %v535
    %1040 = vmatpush.bf16.msra.mxu0 %v529
    %1041 = vmatpush.bf16.msra.mxu0 %v523
    %1042 = vmatmul.bf16.gmra.mxu0 %v916
    %v1043 = vpop.f32.mrf.mxu0
    %v1044 = vadd.f32 %v1031, %v1043
    %v1045 = vpop.f32.mrf.mxu0
    %1046 = vdwg.mxu0
    %1047 = vmatpush.bf16.msra.mxu0 %v518
    %1048 = vmatpush.bf16.msra.mxu0 %v512
    %1049 = vmatpush.bf16.msra.mxu0 %v506
    %1050 = vmatpush.bf16.msra.mxu0 %v500
    %1051 = vmatpush.bf16.msra.mxu0 %v494
    %1052 = vmatpush.bf16.msra.mxu0 %v488
    %1053 = vmatpush.bf16.msra.mxu0 %v482
    %1054 = vmatpush.bf16.msra.mxu0 %v476
    %1055 = vmatmul.bf16.gmra.mxu0 %v915
    %v1056 = vpop.f32.mrf.mxu0
    %v1057 = vadd.f32 %v669, %v1056
    %v1058 = vpop.f32.mrf.mxu0
    %1059 = vdwg.mxu0
    %1060 = vmatpush.bf16.msra.mxu0 %v566
    %1061 = vmatpush.bf16.msra.mxu0 %v560
    %1062 = vmatpush.bf16.msra.mxu0 %v554
    %1063 = vmatpush.bf16.msra.mxu0 %v548
    %1064 = vmatpush.bf16.msra.mxu0 %v542
    %1065 = vmatpush.bf16.msra.mxu0 %v536
    %1066 = vmatpush.bf16.msra.mxu0 %v530
    %1067 = vmatpush.bf16.msra.mxu0 %v524
    %1068 = vmatmul.bf16.gmra.mxu0 %v916
    %v1069 = vpop.f32.mrf.mxu0
    %v1070 = vadd.f32 %v1057, %v1069
    %v1071 = vpop.f32.mrf.mxu0
    %1072 = vdwg.mxu0
    %v1075 = vrot.slane %v966, 7
    %v1076 = vsel %vm835, %v940, %v1075
    %v1078 = vadd.f32 %v909, %v1076
    %v1079 = vxor.u32 %v1078, 2147483648
    %v1080 = vmul.f32 %v1079, 1.442695
    %v1081 = vpow.pop %v1080
    %v1082 = vadd.f32 %v1081, 1.0
    %v1083 = vrcp.pop %v1082
    %v1084 = vmul.f32 %v1082, %v1083
    %v1085 = vsub.f32 1.0, %v1084
    %v1086 = vmul.f32 %v1083, %v1085
    %v1087 = vadd.f32 %v1083, %v1086
    %vm1088 = vweird.f32 %v1082
    %vm1089 = vweird.f32 %v1083
    %vm1090 = vmor %vm1088, %vm1089
    %v1091 = vsel %vm1090, %v1083, %v1087
    %v1092 = vand.u32 2147483647, %v1082
    %vm1093 = vcmp.eq.f32.partialorder %v1092, 8.507059e+37
    %v1094 = vand.u32 %v1082, 2147483648
    %v1095 = vor.u32 1.1754944e-38, %v1094
    %v1096 = vsel %vm1093, %v1095, %v1091
    %v1097 = vmul.f32 1.0, %v1096
    %v1099 = vrot.slane %v909, 2
    %v1103 = vrot.slane %v1018, 7
    %v1104 = vsel %vm835, %v992, %v1103
    %v1106 = vadd.f32 %v1099, %v1104
    %v1107 = vxor.u32 %v1106, 2147483648
    %v1108 = vmul.f32 %v1107, 1.442695
    %v1109 = vpow.pop %v1108
    %v1110 = vadd.f32 %v1109, 1.0
    %v1111 = vrcp.pop %v1110
    %v1112 = vmul.f32 %v1110, %v1111
    %v1113 = vsub.f32 1.0, %v1112
    %v1114 = vmul.f32 %v1111, %v1113
    %v1115 = vadd.f32 %v1111, %v1114
    %vm1116 = vweird.f32 %v1110
    %vm1117 = vweird.f32 %v1111
    %vm1118 = vmor %vm1116, %vm1117
    %v1119 = vsel %vm1118, %v1111, %v1115
    %v1120 = vand.u32 2147483647, %v1110
    %vm1121 = vcmp.eq.f32.partialorder %v1120, 8.507059e+37
    %v1122 = vand.u32 %v1110, 2147483648
    %v1123 = vor.u32 1.1754944e-38, %v1122
    %v1124 = vsel %vm1121, %v1123, %v1119
    %v1125 = vmul.f32 1.0, %v1124
    %v1128 = vrot.slane %v1070, 7
    %v1129 = vsel %vm835, %v1044, %v1128
    %v1131 = vmul.f32 %v1097, %v1129
    %v1132 = vrot.slane %v909, 4
    %v1134 = vadd.f32 %v1132, %v1131
    %v1135 = vtanh.pop %v1134
    %v1136 = vsub.f32 1.0, %v1125
    %v1137 = vmul.f32 %v1136, %v1135
    %v1138 = vmul.f32 %v1125, %v899
    %v1139 = vadd.f32 %v1137, %v1138
    %s1140 = scalar_lea.vmem [#allocation10], 1
    %1141 = vst.msk [vmem:[%s1140] ss:$8 sm:$0x3] %vm903, %v1139
    %1142 = vst.msk [vmem:[%s1140] ss:$8 sm:$0x0] %vm903, %v1139
    %s1143 = scalar_lea.vmem [#allocation2], 2
    %v1144 = vld [vmem:[%s1143] ss:$8 sm:$0xf]
    %v1145 = vld [vmem:[%s1143] ss:$8 sm:$0x30]
    %v1146 = vor.u32 %v1144, %v1145
    %v1148 = vperm.slane %v1139, 0
    %v1149 = vperm.slane %v1139, 1
    %v1152 = vpack.c.bf16 %v1148, %v1148
    %v1153 = vpack.c.bf16 %v1149, %v1149
    %1154 = vmatpush.bf16.msra.mxu0 %v513
    %1155 = vmatpush.bf16.msra.mxu0 %v507
    %1156 = vmatpush.bf16.msra.mxu0 %v501
    %1157 = vmatpush.bf16.msra.mxu0 %v495
    %1158 = vmatpush.bf16.msra.mxu0 %v489
    %1159 = vmatpush.bf16.msra.mxu0 %v483
    %1160 = vmatpush.bf16.msra.mxu0 %v477
    %1161 = vmatpush.bf16.msra.mxu0 %v471
    %1162 = vmatmul.bf16.gmra.mxu0 %v1152
    %v1163 = vpop.f32.mrf.mxu0
    %v1164 = vadd.f32 %v664, %v1163
    %v1165 = vpop.f32.mrf.mxu0
    %1166 = vdwg.mxu0
    %1167 = vmatpush.bf16.msra.mxu0 %v561
    %1168 = vmatpush.bf16.msra.mxu0 %v555
    %1169 = vmatpush.bf16.msra.mxu0 %v549
    %1170 = vmatpush.bf16.msra.mxu0 %v543
    %1171 = vmatpush.bf16.msra.mxu0 %v537
    %1172 = vmatpush.bf16.msra.mxu0 %v531
    %1173 = vmatpush.bf16.msra.mxu0 %v525
    %1174 = vmatpush.bf16.msra.mxu0 %v519
    %1175 = vmatmul.bf16.gmra.mxu0 %v1153
    %v1176 = vpop.f32.mrf.mxu0
    %v1177 = vadd.f32 %v1164, %v1176
    %v1178 = vpop.f32.mrf.mxu0
    %1179 = vdwg.mxu0
    %1180 = vmatpush.bf16.msra.mxu0 %v514
    %1181 = vmatpush.bf16.msra.mxu0 %v508
    %1182 = vmatpush.bf16.msra.mxu0 %v502
    %1183 = vmatpush.bf16.msra.mxu0 %v496
    %1184 = vmatpush.bf16.msra.mxu0 %v490
    %1185 = vmatpush.bf16.msra.mxu0 %v484
    %1186 = vmatpush.bf16.msra.mxu0 %v478
    %1187 = vmatpush.bf16.msra.mxu0 %v472
    %1188 = vmatmul.bf16.gmra.mxu0 %v1152
    %v1189 = vpop.f32.mrf.mxu0
    %v1190 = vadd.f32 %v665, %v1189
    %v1191 = vpop.f32.mrf.mxu0
    %1192 = vdwg.mxu0
    %1193 = vmatpush.bf16.msra.mxu0 %v562
    %1194 = vmatpush.bf16.msra.mxu0 %v556
    %1195 = vmatpush.bf16.msra.mxu0 %v550
    %1196 = vmatpush.bf16.msra.mxu0 %v544
    %1197 = vmatpush.bf16.msra.mxu0 %v538
    %1198 = vmatpush.bf16.msra.mxu0 %v532
    %1199 = vmatpush.bf16.msra.mxu0 %v526
    %1200 = vmatpush.bf16.msra.mxu0 %v520
    %1201 = vmatmul.bf16.gmra.mxu0 %v1153
    %v1202 = vpop.f32.mrf.mxu0
    %v1203 = vadd.f32 %v1190, %v1202
    %v1204 = vpop.f32.mrf.mxu0
    %1205 = vdwg.mxu0
    %1206 = vmatpush.bf16.msra.mxu0 %v515
    %1207 = vmatpush.bf16.msra.mxu0 %v509
    %1208 = vmatpush.bf16.msra.mxu0 %v503
    %1209 = vmatpush.bf16.msra.mxu0 %v497
    %1210 = vmatpush.bf16.msra.mxu0 %v491
    %1211 = vmatpush.bf16.msra.mxu0 %v485
    %1212 = vmatpush.bf16.msra.mxu0 %v479
    %1213 = vmatpush.bf16.msra.mxu0 %v473
    %1214 = vmatmul.bf16.gmra.mxu0 %v1152
    %v1215 = vpop.f32.mrf.mxu0
    %v1216 = vadd.f32 %v666, %v1215
    %v1217 = vpop.f32.mrf.mxu0
    %1218 = vdwg.mxu0
    %1219 = vmatpush.bf16.msra.mxu0 %v563
    %1220 = vmatpush.bf16.msra.mxu0 %v557
    %1221 = vmatpush.bf16.msra.mxu0 %v551
    %1222 = vmatpush.bf16.msra.mxu0 %v545
    %1223 = vmatpush.bf16.msra.mxu0 %v539
    %1224 = vmatpush.bf16.msra.mxu0 %v533
    %1225 = vmatpush.bf16.msra.mxu0 %v527
    %1226 = vmatpush.bf16.msra.mxu0 %v521
    %1227 = vmatmul.bf16.gmra.mxu0 %v1153
    %v1228 = vpop.f32.mrf.mxu0
    %v1229 = vadd.f32 %v1216, %v1228
    %v1230 = vpop.f32.mrf.mxu0
    %1231 = vdwg.mxu0
    %1232 = vmatpush.bf16.msra.mxu0 %v516
    %1233 = vmatpush.bf16.msra.mxu0 %v510
    %1234 = vmatpush.bf16.msra.mxu0 %v504
    %1235 = vmatpush.bf16.msra.mxu0 %v498
    %1236 = vmatpush.bf16.msra.mxu0 %v492
    %1237 = vmatpush.bf16.msra.mxu0 %v486
    %1238 = vmatpush.bf16.msra.mxu0 %v480
    %1239 = vmatpush.bf16.msra.mxu0 %v474
    %1240 = vmatmul.bf16.gmra.mxu0 %v1152
    %v1241 = vpop.f32.mrf.mxu0
    %v1242 = vadd.f32 %v667, %v1241
    %v1243 = vpop.f32.mrf.mxu0
    %1244 = vdwg.mxu0
    %1245 = vmatpush.bf16.msra.mxu0 %v564
    %1246 = vmatpush.bf16.msra.mxu0 %v558
    %1247 = vmatpush.bf16.msra.mxu0 %v552
    %1248 = vmatpush.bf16.msra.mxu0 %v546
    %1249 = vmatpush.bf16.msra.mxu0 %v540
    %1250 = vmatpush.bf16.msra.mxu0 %v534
    %1251 = vmatpush.bf16.msra.mxu0 %v528
    %1252 = vmatpush.bf16.msra.mxu0 %v522
    %1253 = vmatmul.bf16.gmra.mxu0 %v1153
    %v1254 = vpop.f32.mrf.mxu0
    %v1255 = vadd.f32 %v1242, %v1254
    %v1256 = vpop.f32.mrf.mxu0
    %1257 = vdwg.mxu0
    %1258 = vmatpush.bf16.msra.mxu0 %v517
    %1259 = vmatpush.bf16.msra.mxu0 %v511
    %1260 = vmatpush.bf16.msra.mxu0 %v505
    %1261 = vmatpush.bf16.msra.mxu0 %v499
    %1262 = vmatpush.bf16.msra.mxu0 %v493
    %1263 = vmatpush.bf16.msra.mxu0 %v487
    %1264 = vmatpush.bf16.msra.mxu0 %v481
    %1265 = vmatpush.bf16.msra.mxu0 %v475
    %1266 = vmatmul.bf16.gmra.mxu0 %v1152
    %v1267 = vpop.f32.mrf.mxu0
    %v1268 = vadd.f32 %v668, %v1267
    %v1269 = vpop.f32.mrf.mxu0
    %1270 = vdwg.mxu0
    %1271 = vmatpush.bf16.msra.mxu0 %v565
    %1272 = vmatpush.bf16.msra.mxu0 %v559
    %1273 = vmatpush.bf16.msra.mxu0 %v553
    %1274 = vmatpush.bf16.msra.mxu0 %v547
    %1275 = vmatpush.bf16.msra.mxu0 %v541
    %1276 = vmatpush.bf16.msra.mxu0 %v535
    %1277 = vmatpush.bf16.msra.mxu0 %v529
    %1278 = vmatpush.bf16.msra.mxu0 %v523
    %1279 = vmatmul.bf16.gmra.mxu0 %v1153
    %v1280 = vpop.f32.mrf.mxu0
    %v1281 = vadd.f32 %v1268, %v1280
    %v1282 = vpop.f32.mrf.mxu0
    %1283 = vdwg.mxu0
    %1284 = vmatpush.bf16.msra.mxu0 %v518
    %1285 = vmatpush.bf16.msra.mxu0 %v512
    %1286 = vmatpush.bf16.msra.mxu0 %v506
    %1287 = vmatpush.bf16.msra.mxu0 %v500
    %1288 = vmatpush.bf16.msra.mxu0 %v494
    %1289 = vmatpush.bf16.msra.mxu0 %v488
    %1290 = vmatpush.bf16.msra.mxu0 %v482
    %1291 = vmatpush.bf16.msra.mxu0 %v476
    %1292 = vmatmul.bf16.gmra.mxu0 %v1152
    %v1293 = vpop.f32.mrf.mxu0
    %v1294 = vadd.f32 %v669, %v1293
    %v1295 = vpop.f32.mrf.mxu0
    %1296 = vdwg.mxu0
    %1297 = vmatpush.bf16.msra.mxu0 %v566
    %1298 = vmatpush.bf16.msra.mxu0 %v560
    %1299 = vmatpush.bf16.msra.mxu0 %v554
    %1300 = vmatpush.bf16.msra.mxu0 %v548
    %1301 = vmatpush.bf16.msra.mxu0 %v542
    %1302 = vmatpush.bf16.msra.mxu0 %v536
    %1303 = vmatpush.bf16.msra.mxu0 %v530
    %1304 = vmatpush.bf16.msra.mxu0 %v524
    %1305 = vmatmul.bf16.gmra.mxu0 %v1153
    %v1306 = vpop.f32.mrf.mxu0
    %v1307 = vadd.f32 %v1294, %v1306
    %v1308 = vpop.f32.mrf.mxu0
    %1309 = vdwg.mxu0
    %v1312 = vrot.slane %v1203, 7
    %v1313 = vsel %vm835, %v1177, %v1312
    %v1315 = vadd.f32 %v1146, %v1313
    %v1316 = vxor.u32 %v1315, 2147483648
    %v1317 = vmul.f32 %v1316, 1.442695
    %v1318 = vpow.pop %v1317
    %v1319 = vadd.f32 %v1318, 1.0
    %v1320 = vrcp.pop %v1319
    %v1321 = vmul.f32 %v1319, %v1320
    %v1322 = vsub.f32 1.0, %v1321
    %v1323 = vmul.f32 %v1320, %v1322
    %v1324 = vadd.f32 %v1320, %v1323
    %vm1325 = vweird.f32 %v1319
    %vm1326 = vweird.f32 %v1320
    %vm1327 = vmor %vm1325, %vm1326
    %v1328 = vsel %vm1327, %v1320, %v1324
    %v1329 = vand.u32 2147483647, %v1319
    %vm1330 = vcmp.eq.f32.partialorder %v1329, 8.507059e+37
    %v1331 = vand.u32 %v1319, 2147483648
    %v1332 = vor.u32 1.1754944e-38, %v1331
    %v1333 = vsel %vm1330, %v1332, %v1328
    %v1334 = vmul.f32 1.0, %v1333
    %v1336 = vrot.slane %v1146, 2
    %v1340 = vrot.slane %v1255, 7
    %v1341 = vsel %vm835, %v1229, %v1340
    %v1343 = vadd.f32 %v1336, %v1341
    %v1344 = vxor.u32 %v1343, 2147483648
    %v1345 = vmul.f32 %v1344, 1.442695
    %v1346 = vpow.pop %v1345
    %v1347 = vadd.f32 %v1346, 1.0
    %v1348 = vrcp.pop %v1347
    %v1349 = vmul.f32 %v1347, %v1348
    %v1350 = vsub.f32 1.0, %v1349
    %v1351 = vmul.f32 %v1348, %v1350
    %v1352 = vadd.f32 %v1348, %v1351
    %vm1353 = vweird.f32 %v1347
    %vm1354 = vweird.f32 %v1348
    %vm1355 = vmor %vm1353, %vm1354
    %v1356 = vsel %vm1355, %v1348, %v1352
    %v1357 = vand.u32 2147483647, %v1347
    %vm1358 = vcmp.eq.f32.partialorder %v1357, 8.507059e+37
    %v1359 = vand.u32 %v1347, 2147483648
    %v1360 = vor.u32 1.1754944e-38, %v1359
    %v1361 = vsel %vm1358, %v1360, %v1356
    %v1362 = vmul.f32 1.0, %v1361
    %v1365 = vrot.slane %v1307, 7
    %v1366 = vsel %vm835, %v1281, %v1365
    %v1368 = vmul.f32 %v1334, %v1366
    %v1369 = vrot.slane %v1146, 4
    %v1371 = vadd.f32 %v1369, %v1368
    %v1372 = vtanh.pop %v1371
    %v1373 = vsub.f32 1.0, %v1362
    %v1374 = vmul.f32 %v1373, %v1372
    %v1375 = vmul.f32 %v1362, %v1139
    %v1376 = vadd.f32 %v1374, %v1375
    %s1377 = scalar_lea.vmem [#allocation10], 2
    %1378 = vst.msk [vmem:[%s1377] ss:$8 sm:$0x3] %vm903, %v1376
    %1379 = vst.msk [vmem:[%s1377] ss:$8 sm:$0x0] %vm903, %v1376
    %s1380 = scalar_lea.vmem [#allocation2], 3
    %v1381 = vld [vmem:[%s1380] ss:$8 sm:$0xf]
    %v1382 = vld [vmem:[%s1380] ss:$8 sm:$0x30]
    %v1383 = vor.u32 %v1381, %v1382
    %v1385 = vperm.slane %v1376, 0
    %v1386 = vperm.slane %v1376, 1
    %v1389 = vpack.c.bf16 %v1385, %v1385
    %v1390 = vpack.c.bf16 %v1386, %v1386
    %1391 = vmatpush.bf16.msra.mxu0 %v513
    %1392 = vmatpush.bf16.msra.mxu0 %v507
    %1393 = vmatpush.bf16.msra.mxu0 %v501
    %1394 = vmatpush.bf16.msra.mxu0 %v495
    %1395 = vmatpush.bf16.msra.mxu0 %v489
    %1396 = vmatpush.bf16.msra.mxu0 %v483
    %1397 = vmatpush.bf16.msra.mxu0 %v477
    %1398 = vmatpush.bf16.msra.mxu0 %v471
    %1399 = vmatmul.bf16.gmra.mxu0 %v1389
    %v1400 = vpop.f32.mrf.mxu0
    %v1401 = vadd.f32 %v664, %v1400
    %v1402 = vpop.f32.mrf.mxu0
    %1403 = vdwg.mxu0
    %1404 = vmatpush.bf16.msra.mxu0 %v561
    %1405 = vmatpush.bf16.msra.mxu0 %v555
    %1406 = vmatpush.bf16.msra.mxu0 %v549
    %1407 = vmatpush.bf16.msra.mxu0 %v543
    %1408 = vmatpush.bf16.msra.mxu0 %v537
    %1409 = vmatpush.bf16.msra.mxu0 %v531
    %1410 = vmatpush.bf16.msra.mxu0 %v525
    %1411 = vmatpush.bf16.msra.mxu0 %v519
    %1412 = vmatmul.bf16.gmra.mxu0 %v1390
    %v1413 = vpop.f32.mrf.mxu0
    %v1414 = vadd.f32 %v1401, %v1413
    %v1415 = vpop.f32.mrf.mxu0
    %1416 = vdwg.mxu0
    %1417 = vmatpush.bf16.msra.mxu0 %v514
    %1418 = vmatpush.bf16.msra.mxu0 %v508
    %1419 = vmatpush.bf16.msra.mxu0 %v502
    %1420 = vmatpush.bf16.msra.mxu0 %v496
    %1421 = vmatpush.bf16.msra.mxu0 %v490
    %1422 = vmatpush.bf16.msra.mxu0 %v484
    %1423 = vmatpush.bf16.msra.mxu0 %v478
    %1424 = vmatpush.bf16.msra.mxu0 %v472
    %1425 = vmatmul.bf16.gmra.mxu0 %v1389
    %v1426 = vpop.f32.mrf.mxu0
    %v1427 = vadd.f32 %v665, %v1426
    %v1428 = vpop.f32.mrf.mxu0
    %1429 = vdwg.mxu0
    %1430 = vmatpush.bf16.msra.mxu0 %v562
    %1431 = vmatpush.bf16.msra.mxu0 %v556
    %1432 = vmatpush.bf16.msra.mxu0 %v550
    %1433 = vmatpush.bf16.msra.mxu0 %v544
    %1434 = vmatpush.bf16.msra.mxu0 %v538
    %1435 = vmatpush.bf16.msra.mxu0 %v532
    %1436 = vmatpush.bf16.msra.mxu0 %v526
    %1437 = vmatpush.bf16.msra.mxu0 %v520
    %1438 = vmatmul.bf16.gmra.mxu0 %v1390
    %v1439 = vpop.f32.mrf.mxu0
    %v1440 = vadd.f32 %v1427, %v1439
    %v1441 = vpop.f32.mrf.mxu0
    %1442 = vdwg.mxu0
    %1443 = vmatpush.bf16.msra.mxu0 %v515
    %1444 = vmatpush.bf16.msra.mxu0 %v509
    %1445 = vmatpush.bf16.msra.mxu0 %v503
    %1446 = vmatpush.bf16.msra.mxu0 %v497
    %1447 = vmatpush.bf16.msra.mxu0 %v491
    %1448 = vmatpush.bf16.msra.mxu0 %v485
    %1449 = vmatpush.bf16.msra.mxu0 %v479
    %1450 = vmatpush.bf16.msra.mxu0 %v473
    %1451 = vmatmul.bf16.gmra.mxu0 %v1389
    %v1452 = vpop.f32.mrf.mxu0
    %v1453 = vadd.f32 %v666, %v1452
    %v1454 = vpop.f32.mrf.mxu0
    %1455 = vdwg.mxu0
    %1456 = vmatpush.bf16.msra.mxu0 %v563
    %1457 = vmatpush.bf16.msra.mxu0 %v557
    %1458 = vmatpush.bf16.msra.mxu0 %v551
    %1459 = vmatpush.bf16.msra.mxu0 %v545
    %1460 = vmatpush.bf16.msra.mxu0 %v539
    %1461 = vmatpush.bf16.msra.mxu0 %v533
    %1462 = vmatpush.bf16.msra.mxu0 %v527
    %1463 = vmatpush.bf16.msra.mxu0 %v521
    %1464 = vmatmul.bf16.gmra.mxu0 %v1390
    %v1465 = vpop.f32.mrf.mxu0
    %v1466 = vadd.f32 %v1453, %v1465
    %v1467 = vpop.f32.mrf.mxu0
    %1468 = vdwg.mxu0
    %1469 = vmatpush.bf16.msra.mxu0 %v516
    %1470 = vmatpush.bf16.msra.mxu0 %v510
    %1471 = vmatpush.bf16.msra.mxu0 %v504
    %1472 = vmatpush.bf16.msra.mxu0 %v498
    %1473 = vmatpush.bf16.msra.mxu0 %v492
    %1474 = vmatpush.bf16.msra.mxu0 %v486
    %1475 = vmatpush.bf16.msra.mxu0 %v480
    %1476 = vmatpush.bf16.msra.mxu0 %v474
    %1477 = vmatmul.bf16.gmra.mxu0 %v1389
    %v1478 = vpop.f32.mrf.mxu0
    %v1479 = vadd.f32 %v667, %v1478
    %v1480 = vpop.f32.mrf.mxu0
    %1481 = vdwg.mxu0
    %1482 = vmatpush.bf16.msra.mxu0 %v564
    %1483 = vmatpush.bf16.msra.mxu0 %v558
    %1484 = vmatpush.bf16.msra.mxu0 %v552
    %1485 = vmatpush.bf16.msra.mxu0 %v546
    %1486 = vmatpush.bf16.msra.mxu0 %v540
    %1487 = vmatpush.bf16.msra.mxu0 %v534
    %1488 = vmatpush.bf16.msra.mxu0 %v528
    %1489 = vmatpush.bf16.msra.mxu0 %v522
    %1490 = vmatmul.bf16.gmra.mxu0 %v1390
    %v1491 = vpop.f32.mrf.mxu0
    %v1492 = vadd.f32 %v1479, %v1491
    %v1493 = vpop.f32.mrf.mxu0
    %1494 = vdwg.mxu0
    %1495 = vmatpush.bf16.msra.mxu0 %v517
    %1496 = vmatpush.bf16.msra.mxu0 %v511
    %1497 = vmatpush.bf16.msra.mxu0 %v505
    %1498 = vmatpush.bf16.msra.mxu0 %v499
    %1499 = vmatpush.bf16.msra.mxu0 %v493
    %1500 = vmatpush.bf16.msra.mxu0 %v487
    %1501 = vmatpush.bf16.msra.mxu0 %v481
    %1502 = vmatpush.bf16.msra.mxu0 %v475
    %1503 = vmatmul.bf16.gmra.mxu0 %v1389
    %v1504 = vpop.f32.mrf.mxu0
    %v1505 = vadd.f32 %v668, %v1504
    %v1506 = vpop.f32.mrf.mxu0
    %1507 = vdwg.mxu0
    %1508 = vmatpush.bf16.msra.mxu0 %v565
    %1509 = vmatpush.bf16.msra.mxu0 %v559
    %1510 = vmatpush.bf16.msra.mxu0 %v553
    %1511 = vmatpush.bf16.msra.mxu0 %v547
    %1512 = vmatpush.bf16.msra.mxu0 %v541
    %1513 = vmatpush.bf16.msra.mxu0 %v535
    %1514 = vmatpush.bf16.msra.mxu0 %v529
    %1515 = vmatpush.bf16.msra.mxu0 %v523
    %1516 = vmatmul.bf16.gmra.mxu0 %v1390
    %v1517 = vpop.f32.mrf.mxu0
    %v1518 = vadd.f32 %v1505, %v1517
    %v1519 = vpop.f32.mrf.mxu0
    %1520 = vdwg.mxu0
    %1521 = vmatpush.bf16.msra.mxu0 %v518
    %1522 = vmatpush.bf16.msra.mxu0 %v512
    %1523 = vmatpush.bf16.msra.mxu0 %v506
    %1524 = vmatpush.bf16.msra.mxu0 %v500
    %1525 = vmatpush.bf16.msra.mxu0 %v494
    %1526 = vmatpush.bf16.msra.mxu0 %v488
    %1527 = vmatpush.bf16.msra.mxu0 %v482
    %1528 = vmatpush.bf16.msra.mxu0 %v476
    %1529 = vmatmul.bf16.gmra.mxu0 %v1389
    %v1530 = vpop.f32.mrf.mxu0
    %v1531 = vadd.f32 %v669, %v1530
    %v1532 = vpop.f32.mrf.mxu0
    %1533 = vdwg.mxu0
    %1534 = vmatpush.bf16.msra.mxu0 %v566
    %1535 = vmatpush.bf16.msra.mxu0 %v560
    %1536 = vmatpush.bf16.msra.mxu0 %v554
    %1537 = vmatpush.bf16.msra.mxu0 %v548
    %1538 = vmatpush.bf16.msra.mxu0 %v542
    %1539 = vmatpush.bf16.msra.mxu0 %v536
    %1540 = vmatpush.bf16.msra.mxu0 %v530
    %1541 = vmatpush.bf16.msra.mxu0 %v524
    %1542 = vmatmul.bf16.gmra.mxu0 %v1390
    %v1543 = vpop.f32.mrf.mxu0
    %v1544 = vadd.f32 %v1531, %v1543
    %v1545 = vpop.f32.mrf.mxu0
    %1546 = vdwg.mxu0
    %v1549 = vrot.slane %v1440, 7
    %v1550 = vsel %vm835, %v1414, %v1549
    %v1552 = vadd.f32 %v1383, %v1550
    %v1553 = vxor.u32 %v1552, 2147483648
    %v1554 = vmul.f32 %v1553, 1.442695
    %v1555 = vpow.pop %v1554
    %v1556 = vadd.f32 %v1555, 1.0
    %v1557 = vrcp.pop %v1556
    %v1558 = vmul.f32 %v1556, %v1557
    %v1559 = vsub.f32 1.0, %v1558
    %v1560 = vmul.f32 %v1557, %v1559
    %v1561 = vadd.f32 %v1557, %v1560
    %vm1562 = vweird.f32 %v1556
    %vm1563 = vweird.f32 %v1557
    %vm1564 = vmor %vm1562, %vm1563
    %v1565 = vsel %vm1564, %v1557, %v1561
    %v1566 = vand.u32 2147483647, %v1556
    %vm1567 = vcmp.eq.f32.partialorder %v1566, 8.507059e+37
    %v1568 = vand.u32 %v1556, 2147483648
    %v1569 = vor.u32 1.1754944e-38, %v1568
    %v1570 = vsel %vm1567, %v1569, %v1565
    %v1571 = vmul.f32 1.0, %v1570
    %v1573 = vrot.slane %v1383, 2
    %v1577 = vrot.slane %v1492, 7
    %v1578 = vsel %vm835, %v1466, %v1577
    %v1580 = vadd.f32 %v1573, %v1578
    %v1581 = vxor.u32 %v1580, 2147483648
    %v1582 = vmul.f32 %v1581, 1.442695
    %v1583 = vpow.pop %v1582
    %v1584 = vadd.f32 %v1583, 1.0
    %v1585 = vrcp.pop %v1584
    %v1586 = vmul.f32 %v1584, %v1585
    %v1587 = vsub.f32 1.0, %v1586
    %v1588 = vmul.f32 %v1585, %v1587
    %v1589 = vadd.f32 %v1585, %v1588
    %vm1590 = vweird.f32 %v1584
    %vm1591 = vweird.f32 %v1585
    %vm1592 = vmor %vm1590, %vm1591
    %v1593 = vsel %vm1592, %v1585, %v1589
    %v1594 = vand.u32 2147483647, %v1584
    %vm1595 = vcmp.eq.f32.partialorder %v1594, 8.507059e+37
    %v1596 = vand.u32 %v1584, 2147483648
    %v1597 = vor.u32 1.1754944e-38, %v1596
    %v1598 = vsel %vm1595, %v1597, %v1593
    %v1599 = vmul.f32 1.0, %v1598
    %v1602 = vrot.slane %v1544, 7
    %v1603 = vsel %vm835, %v1518, %v1602
    %v1605 = vmul.f32 %v1571, %v1603
    %v1606 = vrot.slane %v1383, 4
    %v1608 = vadd.f32 %v1606, %v1605
    %v1609 = vtanh.pop %v1608
    %v1610 = vsub.f32 1.0, %v1599
    %v1611 = vmul.f32 %v1610, %v1609
    %v1612 = vmul.f32 %v1599, %v1376
    %v1613 = vadd.f32 %v1611, %v1612
    %s1614 = scalar_lea.vmem [#allocation10], 3
    %1615 = vst.msk [vmem:[%s1614] ss:$8 sm:$0x3] %vm903, %v1613
    %1616 = vst.msk [vmem:[%s1614] ss:$8 sm:$0x0] %vm903, %v1613
    %s1617 = scalar_lea.vmem [#allocation2], 4
    %v1618 = vld [vmem:[%s1617] ss:$8 sm:$0xf]
    %v1619 = vld [vmem:[%s1617] ss:$8 sm:$0x30]
    %v1620 = vor.u32 %v1618, %v1619
    %v1622 = vperm.slane %v1613, 0
    %v1623 = vperm.slane %v1613, 1
    %v1626 = vpack.c.bf16 %v1622, %v1622
    %v1627 = vpack.c.bf16 %v1623, %v1623
    %1628 = vmatpush.bf16.msra.mxu0 %v513
    %1629 = vmatpush.bf16.msra.mxu0 %v507
    %1630 = vmatpush.bf16.msra.mxu0 %v501
    %1631 = vmatpush.bf16.msra.mxu0 %v495
    %1632 = vmatpush.bf16.msra.mxu0 %v489
    %1633 = vmatpush.bf16.msra.mxu0 %v483
    %1634 = vmatpush.bf16.msra.mxu0 %v477
    %1635 = vmatpush.bf16.msra.mxu0 %v471
    %1636 = vmatmul.bf16.gmra.mxu0 %v1626
    %v1637 = vpop.f32.mrf.mxu0
    %v1638 = vadd.f32 %v664, %v1637
    %v1639 = vpop.f32.mrf.mxu0
    %1640 = vdwg.mxu0
    %1641 = vmatpush.bf16.msra.mxu0 %v561
    %1642 = vmatpush.bf16.msra.mxu0 %v555
    %1643 = vmatpush.bf16.msra.mxu0 %v549
    %1644 = vmatpush.bf16.msra.mxu0 %v543
    %1645 = vmatpush.bf16.msra.mxu0 %v537
    %1646 = vmatpush.bf16.msra.mxu0 %v531
    %1647 = vmatpush.bf16.msra.mxu0 %v525
    %1648 = vmatpush.bf16.msra.mxu0 %v519
    %1649 = vmatmul.bf16.gmra.mxu0 %v1627
    %v1650 = vpop.f32.mrf.mxu0
    %v1651 = vadd.f32 %v1638, %v1650
    %v1652 = vpop.f32.mrf.mxu0
    %1653 = vdwg.mxu0
    %1654 = vmatpush.bf16.msra.mxu0 %v514
    %1655 = vmatpush.bf16.msra.mxu0 %v508
    %1656 = vmatpush.bf16.msra.mxu0 %v502
    %1657 = vmatpush.bf16.msra.mxu0 %v496
    %1658 = vmatpush.bf16.msra.mxu0 %v490
    %1659 = vmatpush.bf16.msra.mxu0 %v484
    %1660 = vmatpush.bf16.msra.mxu0 %v478
    %1661 = vmatpush.bf16.msra.mxu0 %v472
    %1662 = vmatmul.bf16.gmra.mxu0 %v1626
    %v1663 = vpop.f32.mrf.mxu0
    %v1664 = vadd.f32 %v665, %v1663
    %v1665 = vpop.f32.mrf.mxu0
    %1666 = vdwg.mxu0
    %1667 = vmatpush.bf16.msra.mxu0 %v562
    %1668 = vmatpush.bf16.msra.mxu0 %v556
    %1669 = vmatpush.bf16.msra.mxu0 %v550
    %1670 = vmatpush.bf16.msra.mxu0 %v544
    %1671 = vmatpush.bf16.msra.mxu0 %v538
    %1672 = vmatpush.bf16.msra.mxu0 %v532
    %1673 = vmatpush.bf16.msra.mxu0 %v526
    %1674 = vmatpush.bf16.msra.mxu0 %v520
    %1675 = vmatmul.bf16.gmra.mxu0 %v1627
    %v1676 = vpop.f32.mrf.mxu0
    %v1677 = vadd.f32 %v1664, %v1676
    %v1678 = vpop.f32.mrf.mxu0
    %1679 = vdwg.mxu0
    %1680 = vmatpush.bf16.msra.mxu0 %v515
    %1681 = vmatpush.bf16.msra.mxu0 %v509
    %1682 = vmatpush.bf16.msra.mxu0 %v503
    %1683 = vmatpush.bf16.msra.mxu0 %v497
    %1684 = vmatpush.bf16.msra.mxu0 %v491
    %1685 = vmatpush.bf16.msra.mxu0 %v485
    %1686 = vmatpush.bf16.msra.mxu0 %v479
    %1687 = vmatpush.bf16.msra.mxu0 %v473
    %1688 = vmatmul.bf16.gmra.mxu0 %v1626
    %v1689 = vpop.f32.mrf.mxu0
    %v1690 = vadd.f32 %v666, %v1689
    %v1691 = vpop.f32.mrf.mxu0
    %1692 = vdwg.mxu0
    %1693 = vmatpush.bf16.msra.mxu0 %v563
    %1694 = vmatpush.bf16.msra.mxu0 %v557
    %1695 = vmatpush.bf16.msra.mxu0 %v551
    %1696 = vmatpush.bf16.msra.mxu0 %v545
    %1697 = vmatpush.bf16.msra.mxu0 %v539
    %1698 = vmatpush.bf16.msra.mxu0 %v533
    %1699 = vmatpush.bf16.msra.mxu0 %v527
    %1700 = vmatpush.bf16.msra.mxu0 %v521
    %1701 = vmatmul.bf16.gmra.mxu0 %v1627
    %v1702 = vpop.f32.mrf.mxu0
    %v1703 = vadd.f32 %v1690, %v1702
    %v1704 = vpop.f32.mrf.mxu0
    %1705 = vdwg.mxu0
    %1706 = vmatpush.bf16.msra.mxu0 %v516
    %1707 = vmatpush.bf16.msra.mxu0 %v510
    %1708 = vmatpush.bf16.msra.mxu0 %v504
    %1709 = vmatpush.bf16.msra.mxu0 %v498
    %1710 = vmatpush.bf16.msra.mxu0 %v492
    %1711 = vmatpush.bf16.msra.mxu0 %v486
    %1712 = vmatpush.bf16.msra.mxu0 %v480
    %1713 = vmatpush.bf16.msra.mxu0 %v474
    %1714 = vmatmul.bf16.gmra.mxu0 %v1626
    %v1715 = vpop.f32.mrf.mxu0
    %v1716 = vadd.f32 %v667, %v1715
    %v1717 = vpop.f32.mrf.mxu0
    %1718 = vdwg.mxu0
    %1719 = vmatpush.bf16.msra.mxu0 %v564
    %1720 = vmatpush.bf16.msra.mxu0 %v558
    %1721 = vmatpush.bf16.msra.mxu0 %v552
    %1722 = vmatpush.bf16.msra.mxu0 %v546
    %1723 = vmatpush.bf16.msra.mxu0 %v540
    %1724 = vmatpush.bf16.msra.mxu0 %v534
    %1725 = vmatpush.bf16.msra.mxu0 %v528
    %1726 = vmatpush.bf16.msra.mxu0 %v522
    %1727 = vmatmul.bf16.gmra.mxu0 %v1627
    %v1728 = vpop.f32.mrf.mxu0
    %v1729 = vadd.f32 %v1716, %v1728
    %v1730 = vpop.f32.mrf.mxu0
    %1731 = vdwg.mxu0
    %1732 = vmatpush.bf16.msra.mxu0 %v517
    %1733 = vmatpush.bf16.msra.mxu0 %v511
    %1734 = vmatpush.bf16.msra.mxu0 %v505
    %1735 = vmatpush.bf16.msra.mxu0 %v499
    %1736 = vmatpush.bf16.msra.mxu0 %v493
    %1737 = vmatpush.bf16.msra.mxu0 %v487
    %1738 = vmatpush.bf16.msra.mxu0 %v481
    %1739 = vmatpush.bf16.msra.mxu0 %v475
    %1740 = vmatmul.bf16.gmra.mxu0 %v1626
    %v1741 = vpop.f32.mrf.mxu0
    %v1742 = vadd.f32 %v668, %v1741
    %v1743 = vpop.f32.mrf.mxu0
    %1744 = vdwg.mxu0
    %1745 = vmatpush.bf16.msra.mxu0 %v565
    %1746 = vmatpush.bf16.msra.mxu0 %v559
    %1747 = vmatpush.bf16.msra.mxu0 %v553
    %1748 = vmatpush.bf16.msra.mxu0 %v547
    %1749 = vmatpush.bf16.msra.mxu0 %v541
    %1750 = vmatpush.bf16.msra.mxu0 %v535
    %1751 = vmatpush.bf16.msra.mxu0 %v529
    %1752 = vmatpush.bf16.msra.mxu0 %v523
    %1753 = vmatmul.bf16.gmra.mxu0 %v1627
    %v1754 = vpop.f32.mrf.mxu0
    %v1755 = vadd.f32 %v1742, %v1754
    %v1756 = vpop.f32.mrf.mxu0
    %1757 = vdwg.mxu0
    %1758 = vmatpush.bf16.msra.mxu0 %v518
    %1759 = vmatpush.bf16.msra.mxu0 %v512
    %1760 = vmatpush.bf16.msra.mxu0 %v506
    %1761 = vmatpush.bf16.msra.mxu0 %v500
    %1762 = vmatpush.bf16.msra.mxu0 %v494
    %1763 = vmatpush.bf16.msra.mxu0 %v488
    %1764 = vmatpush.bf16.msra.mxu0 %v482
    %1765 = vmatpush.bf16.msra.mxu0 %v476
    %1766 = vmatmul.bf16.gmra.mxu0 %v1626
    %v1767 = vpop.f32.mrf.mxu0
    %v1768 = vadd.f32 %v669, %v1767
    %v1769 = vpop.f32.mrf.mxu0
    %1770 = vdwg.mxu0
    %1771 = vmatpush.bf16.msra.mxu0 %v566
    %1772 = vmatpush.bf16.msra.mxu0 %v560
    %1773 = vmatpush.bf16.msra.mxu0 %v554
    %1774 = vmatpush.bf16.msra.mxu0 %v548
    %1775 = vmatpush.bf16.msra.mxu0 %v542
    %1776 = vmatpush.bf16.msra.mxu0 %v536
    %1777 = vmatpush.bf16.msra.mxu0 %v530
    %1778 = vmatpush.bf16.msra.mxu0 %v524
    %1779 = vmatmul.bf16.gmra.mxu0 %v1627
    %v1780 = vpop.f32.mrf.mxu0
    %v1781 = vadd.f32 %v1768, %v1780
    %v1782 = vpop.f32.mrf.mxu0
    %1783 = vdwg.mxu0
    %v1786 = vrot.slane %v1677, 7
    %v1787 = vsel %vm835, %v1651, %v1786
    %v1789 = vadd.f32 %v1620, %v1787
    %v1790 = vxor.u32 %v1789, 2147483648
    %v1791 = vmul.f32 %v1790, 1.442695
    %v1792 = vpow.pop %v1791
    %v1793 = vadd.f32 %v1792, 1.0
    %v1794 = vrcp.pop %v1793
    %v1795 = vmul.f32 %v1793, %v1794
    %v1796 = vsub.f32 1.0, %v1795
    %v1797 = vmul.f32 %v1794, %v1796
    %v1798 = vadd.f32 %v1794, %v1797
    %vm1799 = vweird.f32 %v1793
    %vm1800 = vweird.f32 %v1794
    %vm1801 = vmor %vm1799, %vm1800
    %v1802 = vsel %vm1801, %v1794, %v1798
    %v1803 = vand.u32 2147483647, %v1793
    %vm1804 = vcmp.eq.f32.partialorder %v1803, 8.507059e+37
    %v1805 = vand.u32 %v1793, 2147483648
    %v1806 = vor.u32 1.1754944e-38, %v1805
    %v1807 = vsel %vm1804, %v1806, %v1802
    %v1808 = vmul.f32 1.0, %v1807
    %v1810 = vrot.slane %v1620, 2
    %v1814 = vrot.slane %v1729, 7
    %v1815 = vsel %vm835, %v1703, %v1814
    %v1817 = vadd.f32 %v1810, %v1815
    %v1818 = vxor.u32 %v1817, 2147483648
    %v1819 = vmul.f32 %v1818, 1.442695
    %v1820 = vpow.pop %v1819
    %v1821 = vadd.f32 %v1820, 1.0
    %v1822 = vrcp.pop %v1821
    %v1823 = vmul.f32 %v1821, %v1822
    %v1824 = vsub.f32 1.0, %v1823
    %v1825 = vmul.f32 %v1822, %v1824
    %v1826 = vadd.f32 %v1822, %v1825
    %vm1827 = vweird.f32 %v1821
    %vm1828 = vweird.f32 %v1822
    %vm1829 = vmor %vm1827, %vm1828
    %v1830 = vsel %vm1829, %v1822, %v1826
    %v1831 = vand.u32 2147483647, %v1821
    %vm1832 = vcmp.eq.f32.partialorder %v1831, 8.507059e+37
    %v1833 = vand.u32 %v1821, 2147483648
    %v1834 = vor.u32 1.1754944e-38, %v1833
    %v1835 = vsel %vm1832, %v1834, %v1830
    %v1836 = vmul.f32 1.0, %v1835
    %v1839 = vrot.slane %v1781, 7
    %v1840 = vsel %vm835, %v1755, %v1839
    %v1842 = vmul.f32 %v1808, %v1840
    %v1843 = vrot.slane %v1620, 4
    %v1845 = vadd.f32 %v1843, %v1842
    %v1846 = vtanh.pop %v1845
    %v1847 = vsub.f32 1.0, %v1836
    %v1848 = vmul.f32 %v1847, %v1846
    %v1849 = vmul.f32 %v1836, %v1613
    %v1850 = vadd.f32 %v1848, %v1849
    %s1851 = scalar_lea.vmem [#allocation10], 4
    %1852 = vst.msk [vmem:[%s1851] ss:$8 sm:$0x3] %vm903, %v1850
    %1853 = vst.msk [vmem:[%s1851] ss:$8 sm:$0x0] %vm903, %v1850
    %s1854 = scalar_lea.vmem [#allocation2], 5
    %v1855 = vld [vmem:[%s1854] ss:$8 sm:$0xf]
    %v1856 = vld [vmem:[%s1854] ss:$8 sm:$0x30]
    %v1857 = vor.u32 %v1855, %v1856
    %v1859 = vperm.slane %v1850, 0
    %v1860 = vperm.slane %v1850, 1
    %v1863 = vpack.c.bf16 %v1859, %v1859
    %v1864 = vpack.c.bf16 %v1860, %v1860
    %1865 = vmatpush.bf16.msra.mxu0 %v513
    %1866 = vmatpush.bf16.msra.mxu0 %v507
    %1867 = vmatpush.bf16.msra.mxu0 %v501
    %1868 = vmatpush.bf16.msra.mxu0 %v495
    %1869 = vmatpush.bf16.msra.mxu0 %v489
    %1870 = vmatpush.bf16.msra.mxu0 %v483
    %1871 = vmatpush.bf16.msra.mxu0 %v477
    %1872 = vmatpush.bf16.msra.mxu0 %v471
    %1873 = vmatmul.bf16.gmra.mxu0 %v1863
    %v1874 = vpop.f32.mrf.mxu0
    %v1875 = vadd.f32 %v664, %v1874
    %v1876 = vpop.f32.mrf.mxu0
    %1877 = vdwg.mxu0
    %1878 = vmatpush.bf16.msra.mxu0 %v561
    %1879 = vmatpush.bf16.msra.mxu0 %v555
    %1880 = vmatpush.bf16.msra.mxu0 %v549
    %1881 = vmatpush.bf16.msra.mxu0 %v543
    %1882 = vmatpush.bf16.msra.mxu0 %v537
    %1883 = vmatpush.bf16.msra.mxu0 %v531
    %1884 = vmatpush.bf16.msra.mxu0 %v525
    %1885 = vmatpush.bf16.msra.mxu0 %v519
    %1886 = vmatmul.bf16.gmra.mxu0 %v1864
    %v1887 = vpop.f32.mrf.mxu0
    %v1888 = vadd.f32 %v1875, %v1887
    %v1889 = vpop.f32.mrf.mxu0
    %1890 = vdwg.mxu0
    %1891 = vmatpush.bf16.msra.mxu0 %v514
    %1892 = vmatpush.bf16.msra.mxu0 %v508
    %1893 = vmatpush.bf16.msra.mxu0 %v502
    %1894 = vmatpush.bf16.msra.mxu0 %v496
    %1895 = vmatpush.bf16.msra.mxu0 %v490
    %1896 = vmatpush.bf16.msra.mxu0 %v484
    %1897 = vmatpush.bf16.msra.mxu0 %v478
    %1898 = vmatpush.bf16.msra.mxu0 %v472
    %1899 = vmatmul.bf16.gmra.mxu0 %v1863
    %v1900 = vpop.f32.mrf.mxu0
    %v1901 = vadd.f32 %v665, %v1900
    %v1902 = vpop.f32.mrf.mxu0
    %1903 = vdwg.mxu0
    %1904 = vmatpush.bf16.msra.mxu0 %v562
    %1905 = vmatpush.bf16.msra.mxu0 %v556
    %1906 = vmatpush.bf16.msra.mxu0 %v550
    %1907 = vmatpush.bf16.msra.mxu0 %v544
    %1908 = vmatpush.bf16.msra.mxu0 %v538
    %1909 = vmatpush.bf16.msra.mxu0 %v532
    %1910 = vmatpush.bf16.msra.mxu0 %v526
    %1911 = vmatpush.bf16.msra.mxu0 %v520
    %1912 = vmatmul.bf16.gmra.mxu0 %v1864
    %v1913 = vpop.f32.mrf.mxu0
    %v1914 = vadd.f32 %v1901, %v1913
    %v1915 = vpop.f32.mrf.mxu0
    %1916 = vdwg.mxu0
    %1917 = vmatpush.bf16.msra.mxu0 %v515
    %1918 = vmatpush.bf16.msra.mxu0 %v509
    %1919 = vmatpush.bf16.msra.mxu0 %v503
    %1920 = vmatpush.bf16.msra.mxu0 %v497
    %1921 = vmatpush.bf16.msra.mxu0 %v491
    %1922 = vmatpush.bf16.msra.mxu0 %v485
    %1923 = vmatpush.bf16.msra.mxu0 %v479
    %1924 = vmatpush.bf16.msra.mxu0 %v473
    %1925 = vmatmul.bf16.gmra.mxu0 %v1863
    %v1926 = vpop.f32.mrf.mxu0
    %v1927 = vadd.f32 %v666, %v1926
    %v1928 = vpop.f32.mrf.mxu0
    %1929 = vdwg.mxu0
    %1930 = vmatpush.bf16.msra.mxu0 %v563
    %1931 = vmatpush.bf16.msra.mxu0 %v557
    %1932 = vmatpush.bf16.msra.mxu0 %v551
    %1933 = vmatpush.bf16.msra.mxu0 %v545
    %1934 = vmatpush.bf16.msra.mxu0 %v539
    %1935 = vmatpush.bf16.msra.mxu0 %v533
    %1936 = vmatpush.bf16.msra.mxu0 %v527
    %1937 = vmatpush.bf16.msra.mxu0 %v521
    %1938 = vmatmul.bf16.gmra.mxu0 %v1864
    %v1939 = vpop.f32.mrf.mxu0
    %v1940 = vadd.f32 %v1927, %v1939
    %v1941 = vpop.f32.mrf.mxu0
    %1942 = vdwg.mxu0
    %1943 = vmatpush.bf16.msra.mxu0 %v516
    %1944 = vmatpush.bf16.msra.mxu0 %v510
    %1945 = vmatpush.bf16.msra.mxu0 %v504
    %1946 = vmatpush.bf16.msra.mxu0 %v498
    %1947 = vmatpush.bf16.msra.mxu0 %v492
    %1948 = vmatpush.bf16.msra.mxu0 %v486
    %1949 = vmatpush.bf16.msra.mxu0 %v480
    %1950 = vmatpush.bf16.msra.mxu0 %v474
    %1951 = vmatmul.bf16.gmra.mxu0 %v1863
    %v1952 = vpop.f32.mrf.mxu0
    %v1953 = vadd.f32 %v667, %v1952
    %v1954 = vpop.f32.mrf.mxu0
    %1955 = vdwg.mxu0
    %1956 = vmatpush.bf16.msra.mxu0 %v564
    %1957 = vmatpush.bf16.msra.mxu0 %v558
    %1958 = vmatpush.bf16.msra.mxu0 %v552
    %1959 = vmatpush.bf16.msra.mxu0 %v546
    %1960 = vmatpush.bf16.msra.mxu0 %v540
    %1961 = vmatpush.bf16.msra.mxu0 %v534
    %1962 = vmatpush.bf16.msra.mxu0 %v528
    %1963 = vmatpush.bf16.msra.mxu0 %v522
    %1964 = vmatmul.bf16.gmra.mxu0 %v1864
    %v1965 = vpop.f32.mrf.mxu0
    %v1966 = vadd.f32 %v1953, %v1965
    %v1967 = vpop.f32.mrf.mxu0
    %1968 = vdwg.mxu0
    %1969 = vmatpush.bf16.msra.mxu0 %v517
    %1970 = vmatpush.bf16.msra.mxu0 %v511
    %1971 = vmatpush.bf16.msra.mxu0 %v505
    %1972 = vmatpush.bf16.msra.mxu0 %v499
    %1973 = vmatpush.bf16.msra.mxu0 %v493
    %1974 = vmatpush.bf16.msra.mxu0 %v487
    %1975 = vmatpush.bf16.msra.mxu0 %v481
    %1976 = vmatpush.bf16.msra.mxu0 %v475
    %1977 = vmatmul.bf16.gmra.mxu0 %v1863
    %v1978 = vpop.f32.mrf.mxu0
    %v1979 = vadd.f32 %v668, %v1978
    %v1980 = vpop.f32.mrf.mxu0
    %1981 = vdwg.mxu0
    %1982 = vmatpush.bf16.msra.mxu0 %v565
    %1983 = vmatpush.bf16.msra.mxu0 %v559
    %1984 = vmatpush.bf16.msra.mxu0 %v553
    %1985 = vmatpush.bf16.msra.mxu0 %v547
    %1986 = vmatpush.bf16.msra.mxu0 %v541
    %1987 = vmatpush.bf16.msra.mxu0 %v535
    %1988 = vmatpush.bf16.msra.mxu0 %v529
    %1989 = vmatpush.bf16.msra.mxu0 %v523
    %1990 = vmatmul.bf16.gmra.mxu0 %v1864
    %v1991 = vpop.f32.mrf.mxu0
    %v1992 = vadd.f32 %v1979, %v1991
    %v1993 = vpop.f32.mrf.mxu0
    %1994 = vdwg.mxu0
    %1995 = vmatpush.bf16.msra.mxu0 %v518
    %1996 = vmatpush.bf16.msra.mxu0 %v512
    %1997 = vmatpush.bf16.msra.mxu0 %v506
    %1998 = vmatpush.bf16.msra.mxu0 %v500
    %1999 = vmatpush.bf16.msra.mxu0 %v494
    %2000 = vmatpush.bf16.msra.mxu0 %v488
    %2001 = vmatpush.bf16.msra.mxu0 %v482
    %2002 = vmatpush.bf16.msra.mxu0 %v476
    %2003 = vmatmul.bf16.gmra.mxu0 %v1863
    %v2004 = vpop.f32.mrf.mxu0
    %v2005 = vadd.f32 %v669, %v2004
    %v2006 = vpop.f32.mrf.mxu0
    %2007 = vdwg.mxu0
    %2008 = vmatpush.bf16.msra.mxu0 %v566
    %2009 = vmatpush.bf16.msra.mxu0 %v560
    %2010 = vmatpush.bf16.msra.mxu0 %v554
    %2011 = vmatpush.bf16.msra.mxu0 %v548
    %2012 = vmatpush.bf16.msra.mxu0 %v542
    %2013 = vmatpush.bf16.msra.mxu0 %v536
    %2014 = vmatpush.bf16.msra.mxu0 %v530
    %2015 = vmatpush.bf16.msra.mxu0 %v524
    %2016 = vmatmul.bf16.gmra.mxu0 %v1864
    %v2017 = vpop.f32.mrf.mxu0
    %v2018 = vadd.f32 %v2005, %v2017
    %v2019 = vpop.f32.mrf.mxu0
    %2020 = vdwg.mxu0
    %v2023 = vrot.slane %v1914, 7
    %v2024 = vsel %vm835, %v1888, %v2023
    %v2026 = vadd.f32 %v1857, %v2024
    %v2027 = vxor.u32 %v2026, 2147483648
    %v2028 = vmul.f32 %v2027, 1.442695
    %v2029 = vpow.pop %v2028
    %v2030 = vadd.f32 %v2029, 1.0
    %v2031 = vrcp.pop %v2030
    %v2032 = vmul.f32 %v2030, %v2031
    %v2033 = vsub.f32 1.0, %v2032
    %v2034 = vmul.f32 %v2031, %v2033
    %v2035 = vadd.f32 %v2031, %v2034
    %vm2036 = vweird.f32 %v2030
    %vm2037 = vweird.f32 %v2031
    %vm2038 = vmor %vm2036, %vm2037
    %v2039 = vsel %vm2038, %v2031, %v2035
    %v2040 = vand.u32 2147483647, %v2030
    %vm2041 = vcmp.eq.f32.partialorder %v2040, 8.507059e+37
    %v2042 = vand.u32 %v2030, 2147483648
    %v2043 = vor.u32 1.1754944e-38, %v2042
    %v2044 = vsel %vm2041, %v2043, %v2039
    %v2045 = vmul.f32 1.0, %v2044
    %v2047 = vrot.slane %v1857, 2
    %v2051 = vrot.slane %v1966, 7
    %v2052 = vsel %vm835, %v1940, %v2051
    %v2054 = vadd.f32 %v2047, %v2052
    %v2055 = vxor.u32 %v2054, 2147483648
    %v2056 = vmul.f32 %v2055, 1.442695
    %v2057 = vpow.pop %v2056
    %v2058 = vadd.f32 %v2057, 1.0
    %v2059 = vrcp.pop %v2058
    %v2060 = vmul.f32 %v2058, %v2059
    %v2061 = vsub.f32 1.0, %v2060
    %v2062 = vmul.f32 %v2059, %v2061
    %v2063 = vadd.f32 %v2059, %v2062
    %vm2064 = vweird.f32 %v2058
    %vm2065 = vweird.f32 %v2059
    %vm2066 = vmor %vm2064, %vm2065
    %v2067 = vsel %vm2066, %v2059, %v2063
    %v2068 = vand.u32 2147483647, %v2058
    %vm2069 = vcmp.eq.f32.partialorder %v2068, 8.507059e+37
    %v2070 = vand.u32 %v2058, 2147483648
    %v2071 = vor.u32 1.1754944e-38, %v2070
    %v2072 = vsel %vm2069, %v2071, %v2067
    %v2073 = vmul.f32 1.0, %v2072
    %v2076 = vrot.slane %v2018, 7
    %v2077 = vsel %vm835, %v1992, %v2076
    %v2079 = vmul.f32 %v2045, %v2077
    %v2080 = vrot.slane %v1857, 4
    %v2082 = vadd.f32 %v2080, %v2079
    %v2083 = vtanh.pop %v2082
    %v2084 = vsub.f32 1.0, %v2073
    %v2085 = vmul.f32 %v2084, %v2083
    %v2086 = vmul.f32 %v2073, %v1850
    %v2087 = vadd.f32 %v2085, %v2086
    %s2088 = scalar_lea.vmem [#allocation10], 5
    %2089 = vst.msk [vmem:[%s2088] ss:$8 sm:$0x3] %vm903, %v2087
    %2090 = vst.msk [vmem:[%s2088] ss:$8 sm:$0x0] %vm903, %v2087
    %s2091 = scalar_lea.vmem [#allocation2], 6
    %v2092 = vld [vmem:[%s2091] ss:$8 sm:$0xf]
    %v2093 = vld [vmem:[%s2091] ss:$8 sm:$0x30]
    %v2094 = vor.u32 %v2092, %v2093
    %v2096 = vperm.slane %v2087, 0
    %v2097 = vperm.slane %v2087, 1
    %v2100 = vpack.c.bf16 %v2096, %v2096
    %v2101 = vpack.c.bf16 %v2097, %v2097
    %2102 = vmatpush.bf16.msra.mxu0 %v513
    %2103 = vmatpush.bf16.msra.mxu0 %v507
    %2104 = vmatpush.bf16.msra.mxu0 %v501
    %2105 = vmatpush.bf16.msra.mxu0 %v495
    %2106 = vmatpush.bf16.msra.mxu0 %v489
    %2107 = vmatpush.bf16.msra.mxu0 %v483
    %2108 = vmatpush.bf16.msra.mxu0 %v477
    %2109 = vmatpush.bf16.msra.mxu0 %v471
    %2110 = vmatmul.bf16.gmra.mxu0 %v2100
    %v2111 = vpop.f32.mrf.mxu0
    %v2112 = vadd.f32 %v664, %v2111
    %v2113 = vpop.f32.mrf.mxu0
    %2114 = vdwg.mxu0
    %2115 = vmatpush.bf16.msra.mxu0 %v561
    %2116 = vmatpush.bf16.msra.mxu0 %v555
    %2117 = vmatpush.bf16.msra.mxu0 %v549
    %2118 = vmatpush.bf16.msra.mxu0 %v543
    %2119 = vmatpush.bf16.msra.mxu0 %v537
    %2120 = vmatpush.bf16.msra.mxu0 %v531
    %2121 = vmatpush.bf16.msra.mxu0 %v525
    %2122 = vmatpush.bf16.msra.mxu0 %v519
    %2123 = vmatmul.bf16.gmra.mxu0 %v2101
    %v2124 = vpop.f32.mrf.mxu0
    %v2125 = vadd.f32 %v2112, %v2124
    %v2126 = vpop.f32.mrf.mxu0
    %2127 = vdwg.mxu0
    %2128 = vmatpush.bf16.msra.mxu0 %v514
    %2129 = vmatpush.bf16.msra.mxu0 %v508
    %2130 = vmatpush.bf16.msra.mxu0 %v502
    %2131 = vmatpush.bf16.msra.mxu0 %v496
    %2132 = vmatpush.bf16.msra.mxu0 %v490
    %2133 = vmatpush.bf16.msra.mxu0 %v484
    %2134 = vmatpush.bf16.msra.mxu0 %v478
    %2135 = vmatpush.bf16.msra.mxu0 %v472
    %2136 = vmatmul.bf16.gmra.mxu0 %v2100
    %v2137 = vpop.f32.mrf.mxu0
    %v2138 = vadd.f32 %v665, %v2137
    %v2139 = vpop.f32.mrf.mxu0
    %2140 = vdwg.mxu0
    %2141 = vmatpush.bf16.msra.mxu0 %v562
    %2142 = vmatpush.bf16.msra.mxu0 %v556
    %2143 = vmatpush.bf16.msra.mxu0 %v550
    %2144 = vmatpush.bf16.msra.mxu0 %v544
    %2145 = vmatpush.bf16.msra.mxu0 %v538
    %2146 = vmatpush.bf16.msra.mxu0 %v532
    %2147 = vmatpush.bf16.msra.mxu0 %v526
    %2148 = vmatpush.bf16.msra.mxu0 %v520
    %2149 = vmatmul.bf16.gmra.mxu0 %v2101
    %v2150 = vpop.f32.mrf.mxu0
    %v2151 = vadd.f32 %v2138, %v2150
    %v2152 = vpop.f32.mrf.mxu0
    %2153 = vdwg.mxu0
    %2154 = vmatpush.bf16.msra.mxu0 %v515
    %2155 = vmatpush.bf16.msra.mxu0 %v509
    %2156 = vmatpush.bf16.msra.mxu0 %v503
    %2157 = vmatpush.bf16.msra.mxu0 %v497
    %2158 = vmatpush.bf16.msra.mxu0 %v491
    %2159 = vmatpush.bf16.msra.mxu0 %v485
    %2160 = vmatpush.bf16.msra.mxu0 %v479
    %2161 = vmatpush.bf16.msra.mxu0 %v473
    %2162 = vmatmul.bf16.gmra.mxu0 %v2100
    %v2163 = vpop.f32.mrf.mxu0
    %v2164 = vadd.f32 %v666, %v2163
    %v2165 = vpop.f32.mrf.mxu0
    %2166 = vdwg.mxu0
    %2167 = vmatpush.bf16.msra.mxu0 %v563
    %2168 = vmatpush.bf16.msra.mxu0 %v557
    %2169 = vmatpush.bf16.msra.mxu0 %v551
    %2170 = vmatpush.bf16.msra.mxu0 %v545
    %2171 = vmatpush.bf16.msra.mxu0 %v539
    %2172 = vmatpush.bf16.msra.mxu0 %v533
    %2173 = vmatpush.bf16.msra.mxu0 %v527
    %2174 = vmatpush.bf16.msra.mxu0 %v521
    %2175 = vmatmul.bf16.gmra.mxu0 %v2101
    %v2176 = vpop.f32.mrf.mxu0
    %v2177 = vadd.f32 %v2164, %v2176
    %v2178 = vpop.f32.mrf.mxu0
    %2179 = vdwg.mxu0
    %2180 = vmatpush.bf16.msra.mxu0 %v516
    %2181 = vmatpush.bf16.msra.mxu0 %v510
    %2182 = vmatpush.bf16.msra.mxu0 %v504
    %2183 = vmatpush.bf16.msra.mxu0 %v498
    %2184 = vmatpush.bf16.msra.mxu0 %v492
    %2185 = vmatpush.bf16.msra.mxu0 %v486
    %2186 = vmatpush.bf16.msra.mxu0 %v480
    %2187 = vmatpush.bf16.msra.mxu0 %v474
    %2188 = vmatmul.bf16.gmra.mxu0 %v2100
    %v2189 = vpop.f32.mrf.mxu0
    %v2190 = vadd.f32 %v667, %v2189
    %v2191 = vpop.f32.mrf.mxu0
    %2192 = vdwg.mxu0
    %2193 = vmatpush.bf16.msra.mxu0 %v564
    %2194 = vmatpush.bf16.msra.mxu0 %v558
    %2195 = vmatpush.bf16.msra.mxu0 %v552
    %2196 = vmatpush.bf16.msra.mxu0 %v546
    %2197 = vmatpush.bf16.msra.mxu0 %v540
    %2198 = vmatpush.bf16.msra.mxu0 %v534
    %2199 = vmatpush.bf16.msra.mxu0 %v528
    %2200 = vmatpush.bf16.msra.mxu0 %v522
    %2201 = vmatmul.bf16.gmra.mxu0 %v2101
    %v2202 = vpop.f32.mrf.mxu0
    %v2203 = vadd.f32 %v2190, %v2202
    %v2204 = vpop.f32.mrf.mxu0
    %2205 = vdwg.mxu0
    %2206 = vmatpush.bf16.msra.mxu0 %v517
    %2207 = vmatpush.bf16.msra.mxu0 %v511
    %2208 = vmatpush.bf16.msra.mxu0 %v505
    %2209 = vmatpush.bf16.msra.mxu0 %v499
    %2210 = vmatpush.bf16.msra.mxu0 %v493
    %2211 = vmatpush.bf16.msra.mxu0 %v487
    %2212 = vmatpush.bf16.msra.mxu0 %v481
    %2213 = vmatpush.bf16.msra.mxu0 %v475
    %2214 = vmatmul.bf16.gmra.mxu0 %v2100
    %v2215 = vpop.f32.mrf.mxu0
    %v2216 = vadd.f32 %v668, %v2215
    %v2217 = vpop.f32.mrf.mxu0
    %2218 = vdwg.mxu0
    %2219 = vmatpush.bf16.msra.mxu0 %v565
    %2220 = vmatpush.bf16.msra.mxu0 %v559
    %2221 = vmatpush.bf16.msra.mxu0 %v553
    %2222 = vmatpush.bf16.msra.mxu0 %v547
    %2223 = vmatpush.bf16.msra.mxu0 %v541
    %2224 = vmatpush.bf16.msra.mxu0 %v535
    %2225 = vmatpush.bf16.msra.mxu0 %v529
    %2226 = vmatpush.bf16.msra.mxu0 %v523
    %2227 = vmatmul.bf16.gmra.mxu0 %v2101
    %v2228 = vpop.f32.mrf.mxu0
    %v2229 = vadd.f32 %v2216, %v2228
    %v2230 = vpop.f32.mrf.mxu0
    %2231 = vdwg.mxu0
    %2232 = vmatpush.bf16.msra.mxu0 %v518
    %2233 = vmatpush.bf16.msra.mxu0 %v512
    %2234 = vmatpush.bf16.msra.mxu0 %v506
    %2235 = vmatpush.bf16.msra.mxu0 %v500
    %2236 = vmatpush.bf16.msra.mxu0 %v494
    %2237 = vmatpush.bf16.msra.mxu0 %v488
    %2238 = vmatpush.bf16.msra.mxu0 %v482
    %2239 = vmatpush.bf16.msra.mxu0 %v476
    %2240 = vmatmul.bf16.gmra.mxu0 %v2100
    %v2241 = vpop.f32.mrf.mxu0
    %v2242 = vadd.f32 %v669, %v2241
    %v2243 = vpop.f32.mrf.mxu0
    %2244 = vdwg.mxu0
    %2245 = vmatpush.bf16.msra.mxu0 %v566
    %2246 = vmatpush.bf16.msra.mxu0 %v560
    %2247 = vmatpush.bf16.msra.mxu0 %v554
    %2248 = vmatpush.bf16.msra.mxu0 %v548
    %2249 = vmatpush.bf16.msra.mxu0 %v542
    %2250 = vmatpush.bf16.msra.mxu0 %v536
    %2251 = vmatpush.bf16.msra.mxu0 %v530
    %2252 = vmatpush.bf16.msra.mxu0 %v524
    %2253 = vmatmul.bf16.gmra.mxu0 %v2101
    %v2254 = vpop.f32.mrf.mxu0
    %v2255 = vadd.f32 %v2242, %v2254
    %v2256 = vpop.f32.mrf.mxu0
    %2257 = vdwg.mxu0
    %v2260 = vrot.slane %v2151, 7
    %v2261 = vsel %vm835, %v2125, %v2260
    %v2263 = vadd.f32 %v2094, %v2261
    %v2264 = vxor.u32 %v2263, 2147483648
    %v2265 = vmul.f32 %v2264, 1.442695
    %v2266 = vpow.pop %v2265
    %v2267 = vadd.f32 %v2266, 1.0
    %v2268 = vrcp.pop %v2267
    %v2269 = vmul.f32 %v2267, %v2268
    %v2270 = vsub.f32 1.0, %v2269
    %v2271 = vmul.f32 %v2268, %v2270
    %v2272 = vadd.f32 %v2268, %v2271
    %vm2273 = vweird.f32 %v2267
    %vm2274 = vweird.f32 %v2268
    %vm2275 = vmor %vm2273, %vm2274
    %v2276 = vsel %vm2275, %v2268, %v2272
    %v2277 = vand.u32 2147483647, %v2267
    %vm2278 = vcmp.eq.f32.partialorder %v2277, 8.507059e+37
    %v2279 = vand.u32 %v2267, 2147483648
    %v2280 = vor.u32 1.1754944e-38, %v2279
    %v2281 = vsel %vm2278, %v2280, %v2276
    %v2282 = vmul.f32 1.0, %v2281
    %v2284 = vrot.slane %v2094, 2
    %v2288 = vrot.slane %v2203, 7
    %v2289 = vsel %vm835, %v2177, %v2288
    %v2291 = vadd.f32 %v2284, %v2289
    %v2292 = vxor.u32 %v2291, 2147483648
    %v2293 = vmul.f32 %v2292, 1.442695
    %v2294 = vpow.pop %v2293
    %v2295 = vadd.f32 %v2294, 1.0
    %v2296 = vrcp.pop %v2295
    %v2297 = vmul.f32 %v2295, %v2296
    %v2298 = vsub.f32 1.0, %v2297
    %v2299 = vmul.f32 %v2296, %v2298
    %v2300 = vadd.f32 %v2296, %v2299
    %vm2301 = vweird.f32 %v2295
    %vm2302 = vweird.f32 %v2296
    %vm2303 = vmor %vm2301, %vm2302
    %v2304 = vsel %vm2303, %v2296, %v2300
    %v2305 = vand.u32 2147483647, %v2295
    %vm2306 = vcmp.eq.f32.partialorder %v2305, 8.507059e+37
    %v2307 = vand.u32 %v2295, 2147483648
    %v2308 = vor.u32 1.1754944e-38, %v2307
    %v2309 = vsel %vm2306, %v2308, %v2304
    %v2310 = vmul.f32 1.0, %v2309
    %v2313 = vrot.slane %v2255, 7
    %v2314 = vsel %vm835, %v2229, %v2313
    %v2316 = vmul.f32 %v2282, %v2314
    %v2317 = vrot.slane %v2094, 4
    %v2319 = vadd.f32 %v2317, %v2316
    %v2320 = vtanh.pop %v2319
    %v2321 = vsub.f32 1.0, %v2310
    %v2322 = vmul.f32 %v2321, %v2320
    %v2323 = vmul.f32 %v2310, %v2087
    %v2324 = vadd.f32 %v2322, %v2323
    %s2325 = scalar_lea.vmem [#allocation10], 6
    %2326 = vst.msk [vmem:[%s2325] ss:$8 sm:$0x3] %vm903, %v2324
    %2327 = vst.msk [vmem:[%s2325] ss:$8 sm:$0x0] %vm903, %v2324
    %s2328 = scalar_lea.vmem [#allocation2], 7
    %v2329 = vld [vmem:[%s2328] ss:$8 sm:$0xf]
    %v2330 = vld [vmem:[%s2328] ss:$8 sm:$0x30]
    %v2331 = vor.u32 %v2329, %v2330
    %v2333 = vperm.slane %v2324, 0
    %v2334 = vperm.slane %v2324, 1
    %v2337 = vpack.c.bf16 %v2333, %v2333
    %v2338 = vpack.c.bf16 %v2334, %v2334
    %2339 = vmatpush.bf16.msra.mxu0 %v513
    %2340 = vmatpush.bf16.msra.mxu0 %v507
    %2341 = vmatpush.bf16.msra.mxu0 %v501
    %2342 = vmatpush.bf16.msra.mxu0 %v495
    %2343 = vmatpush.bf16.msra.mxu0 %v489
    %2344 = vmatpush.bf16.msra.mxu0 %v483
    %2345 = vmatpush.bf16.msra.mxu0 %v477
    %2346 = vmatpush.bf16.msra.mxu0 %v471
    %2347 = vmatmul.bf16.gmra.mxu0 %v2337
    %v2348 = vpop.f32.mrf.mxu0
    %v2349 = vadd.f32 %v664, %v2348
    %v2350 = vpop.f32.mrf.mxu0
    %2351 = vdwg.mxu0
    %2352 = vmatpush.bf16.msra.mxu0 %v561
    %2353 = vmatpush.bf16.msra.mxu0 %v555
    %2354 = vmatpush.bf16.msra.mxu0 %v549
    %2355 = vmatpush.bf16.msra.mxu0 %v543
    %2356 = vmatpush.bf16.msra.mxu0 %v537
    %2357 = vmatpush.bf16.msra.mxu0 %v531
    %2358 = vmatpush.bf16.msra.mxu0 %v525
    %2359 = vmatpush.bf16.msra.mxu0 %v519
    %2360 = vmatmul.bf16.gmra.mxu0 %v2338
    %v2361 = vpop.f32.mrf.mxu0
    %v2362 = vadd.f32 %v2349, %v2361
    %v2363 = vpop.f32.mrf.mxu0
    %2364 = vdwg.mxu0
    %2365 = vmatpush.bf16.msra.mxu0 %v514
    %2366 = vmatpush.bf16.msra.mxu0 %v508
    %2367 = vmatpush.bf16.msra.mxu0 %v502
    %2368 = vmatpush.bf16.msra.mxu0 %v496
    %2369 = vmatpush.bf16.msra.mxu0 %v490
    %2370 = vmatpush.bf16.msra.mxu0 %v484
    %2371 = vmatpush.bf16.msra.mxu0 %v478
    %2372 = vmatpush.bf16.msra.mxu0 %v472
    %2373 = vmatmul.bf16.gmra.mxu0 %v2337
    %v2374 = vpop.f32.mrf.mxu0
    %v2375 = vadd.f32 %v665, %v2374
    %v2376 = vpop.f32.mrf.mxu0
    %2377 = vdwg.mxu0
    %2378 = vmatpush.bf16.msra.mxu0 %v562
    %2379 = vmatpush.bf16.msra.mxu0 %v556
    %2380 = vmatpush.bf16.msra.mxu0 %v550
    %2381 = vmatpush.bf16.msra.mxu0 %v544
    %2382 = vmatpush.bf16.msra.mxu0 %v538
    %2383 = vmatpush.bf16.msra.mxu0 %v532
    %2384 = vmatpush.bf16.msra.mxu0 %v526
    %2385 = vmatpush.bf16.msra.mxu0 %v520
    %2386 = vmatmul.bf16.gmra.mxu0 %v2338
    %v2387 = vpop.f32.mrf.mxu0
    %v2388 = vadd.f32 %v2375, %v2387
    %v2389 = vpop.f32.mrf.mxu0
    %2390 = vdwg.mxu0
    %2391 = vmatpush.bf16.msra.mxu0 %v515
    %2392 = vmatpush.bf16.msra.mxu0 %v509
    %2393 = vmatpush.bf16.msra.mxu0 %v503
    %2394 = vmatpush.bf16.msra.mxu0 %v497
    %2395 = vmatpush.bf16.msra.mxu0 %v491
    %2396 = vmatpush.bf16.msra.mxu0 %v485
    %2397 = vmatpush.bf16.msra.mxu0 %v479
    %2398 = vmatpush.bf16.msra.mxu0 %v473
    %2399 = vmatmul.bf16.gmra.mxu0 %v2337
    %v2400 = vpop.f32.mrf.mxu0
    %v2401 = vadd.f32 %v666, %v2400
    %v2402 = vpop.f32.mrf.mxu0
    %2403 = vdwg.mxu0
    %2404 = vmatpush.bf16.msra.mxu0 %v563
    %2405 = vmatpush.bf16.msra.mxu0 %v557
    %2406 = vmatpush.bf16.msra.mxu0 %v551
    %2407 = vmatpush.bf16.msra.mxu0 %v545
    %2408 = vmatpush.bf16.msra.mxu0 %v539
    %2409 = vmatpush.bf16.msra.mxu0 %v533
    %2410 = vmatpush.bf16.msra.mxu0 %v527
    %2411 = vmatpush.bf16.msra.mxu0 %v521
    %2412 = vmatmul.bf16.gmra.mxu0 %v2338
    %v2413 = vpop.f32.mrf.mxu0
    %v2414 = vadd.f32 %v2401, %v2413
    %v2415 = vpop.f32.mrf.mxu0
    %2416 = vdwg.mxu0
    %2417 = vmatpush.bf16.msra.mxu0 %v516
    %2418 = vmatpush.bf16.msra.mxu0 %v510
    %2419 = vmatpush.bf16.msra.mxu0 %v504
    %2420 = vmatpush.bf16.msra.mxu0 %v498
    %2421 = vmatpush.bf16.msra.mxu0 %v492
    %2422 = vmatpush.bf16.msra.mxu0 %v486
    %2423 = vmatpush.bf16.msra.mxu0 %v480
    %2424 = vmatpush.bf16.msra.mxu0 %v474
    %2425 = vmatmul.bf16.gmra.mxu0 %v2337
    %v2426 = vpop.f32.mrf.mxu0
    %v2427 = vadd.f32 %v667, %v2426
    %v2428 = vpop.f32.mrf.mxu0
    %2429 = vdwg.mxu0
    %2430 = vmatpush.bf16.msra.mxu0 %v564
    %2431 = vmatpush.bf16.msra.mxu0 %v558
    %2432 = vmatpush.bf16.msra.mxu0 %v552
    %2433 = vmatpush.bf16.msra.mxu0 %v546
    %2434 = vmatpush.bf16.msra.mxu0 %v540
    %2435 = vmatpush.bf16.msra.mxu0 %v534
    %2436 = vmatpush.bf16.msra.mxu0 %v528
    %2437 = vmatpush.bf16.msra.mxu0 %v522
    %2438 = vmatmul.bf16.gmra.mxu0 %v2338
    %v2439 = vpop.f32.mrf.mxu0
    %v2440 = vadd.f32 %v2427, %v2439
    %v2441 = vpop.f32.mrf.mxu0
    %2442 = vdwg.mxu0
    %2443 = vmatpush.bf16.msra.mxu0 %v517
    %2444 = vmatpush.bf16.msra.mxu0 %v511
    %2445 = vmatpush.bf16.msra.mxu0 %v505
    %2446 = vmatpush.bf16.msra.mxu0 %v499
    %2447 = vmatpush.bf16.msra.mxu0 %v493
    %2448 = vmatpush.bf16.msra.mxu0 %v487
    %2449 = vmatpush.bf16.msra.mxu0 %v481
    %2450 = vmatpush.bf16.msra.mxu0 %v475
    %2451 = vmatmul.bf16.gmra.mxu0 %v2337
    %v2452 = vpop.f32.mrf.mxu0
    %v2453 = vadd.f32 %v668, %v2452
    %v2454 = vpop.f32.mrf.mxu0
    %2455 = vdwg.mxu0
    %2456 = vmatpush.bf16.msra.mxu0 %v565
    %2457 = vmatpush.bf16.msra.mxu0 %v559
    %2458 = vmatpush.bf16.msra.mxu0 %v553
    %2459 = vmatpush.bf16.msra.mxu0 %v547
    %2460 = vmatpush.bf16.msra.mxu0 %v541
    %2461 = vmatpush.bf16.msra.mxu0 %v535
    %2462 = vmatpush.bf16.msra.mxu0 %v529
    %2463 = vmatpush.bf16.msra.mxu0 %v523
    %2464 = vmatmul.bf16.gmra.mxu0 %v2338
    %v2465 = vpop.f32.mrf.mxu0
    %v2466 = vadd.f32 %v2453, %v2465
    %v2467 = vpop.f32.mrf.mxu0
    %2468 = vdwg.mxu0
    %2469 = vmatpush.bf16.msra.mxu0 %v518
    %2470 = vmatpush.bf16.msra.mxu0 %v512
    %2471 = vmatpush.bf16.msra.mxu0 %v506
    %2472 = vmatpush.bf16.msra.mxu0 %v500
    %2473 = vmatpush.bf16.msra.mxu0 %v494
    %2474 = vmatpush.bf16.msra.mxu0 %v488
    %2475 = vmatpush.bf16.msra.mxu0 %v482
    %2476 = vmatpush.bf16.msra.mxu0 %v476
    %2477 = vmatmul.bf16.gmra.mxu0 %v2337
    %v2478 = vpop.f32.mrf.mxu0
    %v2479 = vadd.f32 %v669, %v2478
    %v2480 = vpop.f32.mrf.mxu0
    %2481 = vdwg.mxu0
    %2482 = vmatpush.bf16.msra.mxu0 %v566
    %2483 = vmatpush.bf16.msra.mxu0 %v560
    %2484 = vmatpush.bf16.msra.mxu0 %v554
    %2485 = vmatpush.bf16.msra.mxu0 %v548
    %2486 = vmatpush.bf16.msra.mxu0 %v542
    %2487 = vmatpush.bf16.msra.mxu0 %v536
    %2488 = vmatpush.bf16.msra.mxu0 %v530
    %2489 = vmatpush.bf16.msra.mxu0 %v524
    %2490 = vmatmul.bf16.gmra.mxu0 %v2338
    %v2491 = vpop.f32.mrf.mxu0
    %v2492 = vadd.f32 %v2479, %v2491
    %v2493 = vpop.f32.mrf.mxu0
    %2494 = vdwg.mxu0
    %v2497 = vrot.slane %v2388, 7
    %v2498 = vsel %vm835, %v2362, %v2497
    %v2500 = vadd.f32 %v2331, %v2498
    %v2501 = vxor.u32 %v2500, 2147483648
    %v2502 = vmul.f32 %v2501, 1.442695
    %v2503 = vpow.pop %v2502
    %v2504 = vadd.f32 %v2503, 1.0
    %v2505 = vrcp.pop %v2504
    %v2506 = vmul.f32 %v2504, %v2505
    %v2507 = vsub.f32 1.0, %v2506
    %v2508 = vmul.f32 %v2505, %v2507
    %v2509 = vadd.f32 %v2505, %v2508
    %vm2510 = vweird.f32 %v2504
    %vm2511 = vweird.f32 %v2505
    %vm2512 = vmor %vm2510, %vm2511
    %v2513 = vsel %vm2512, %v2505, %v2509
    %v2514 = vand.u32 2147483647, %v2504
    %vm2515 = vcmp.eq.f32.partialorder %v2514, 8.507059e+37
    %v2516 = vand.u32 %v2504, 2147483648
    %v2517 = vor.u32 1.1754944e-38, %v2516
    %v2518 = vsel %vm2515, %v2517, %v2513
    %v2519 = vmul.f32 1.0, %v2518
    %v2521 = vrot.slane %v2331, 2
    %v2525 = vrot.slane %v2440, 7
    %v2526 = vsel %vm835, %v2414, %v2525
    %v2528 = vadd.f32 %v2521, %v2526
    %v2529 = vxor.u32 %v2528, 2147483648
    %v2530 = vmul.f32 %v2529, 1.442695
    %v2531 = vpow.pop %v2530
    %v2532 = vadd.f32 %v2531, 1.0
    %v2533 = vrcp.pop %v2532
    %v2534 = vmul.f32 %v2532, %v2533
    %v2535 = vsub.f32 1.0, %v2534
    %v2536 = vmul.f32 %v2533, %v2535
    %v2537 = vadd.f32 %v2533, %v2536
    %vm2538 = vweird.f32 %v2532
    %vm2539 = vweird.f32 %v2533
    %vm2540 = vmor %vm2538, %vm2539
    %v2541 = vsel %vm2540, %v2533, %v2537
    %v2542 = vand.u32 2147483647, %v2532
    %vm2543 = vcmp.eq.f32.partialorder %v2542, 8.507059e+37
    %v2544 = vand.u32 %v2532, 2147483648
    %v2545 = vor.u32 1.1754944e-38, %v2544
    %v2546 = vsel %vm2543, %v2545, %v2541
    %v2547 = vmul.f32 1.0, %v2546
    %v2550 = vrot.slane %v2492, 7
    %v2551 = vsel %vm835, %v2466, %v2550
    %v2553 = vmul.f32 %v2519, %v2551
    %v2554 = vrot.slane %v2331, 4
    %v2556 = vadd.f32 %v2554, %v2553
    %v2557 = vtanh.pop %v2556
    %v2558 = vsub.f32 1.0, %v2547
    %v2559 = vmul.f32 %v2558, %v2557
    %v2560 = vmul.f32 %v2547, %v2324
    %v2561 = vadd.f32 %v2559, %v2560
    %s2562 = scalar_lea.vmem [#allocation10], 7
    %2563 = vst.msk [vmem:[%s2562] ss:$8 sm:$0x3] %vm903, %v2561
    %2564 = vst.msk [vmem:[%s2562] ss:$8 sm:$0x0] %vm903, %v2561
    // Predicated region
    $region34: #{tpu_custom_call.1} parent=1 // pred_check
      _
    $region35: #{tpu_custom_call.1} parent=1 // pred_check_branch
      %2566 = sbr.rel (0) target = $region37
    $region36: #{tpu_custom_call.1} parent=1 // pred_region
      %2568 = vsyncadd [#allocation4], 0
      %s2570 = sshll.u32 [#allocation10], 4
      %s2571 = int_to_ptr.vmem [resolvable:$true] %s2570
      %s2572 = sshll.u32 %s4, 4
      %s2573 = int_to_ptr.hbm [resolvable:$true] %s2572
      %2575 = dma.vmem_to_hbm [thread:$0]  %s2571, 256, %s2573, [#allocation4]
    $region37: #{tpu_custom_call.1} parent=1 // pred_fallthru
      _
    // Predicated region
    $region38: #{tpu_custom_call.1} parent=1 // pred_check
      _
    $region39: #{tpu_custom_call.1} parent=1 // pred_check_branch
      %2577 = sbr.rel (0) target = $region41
    $region40: #{tpu_custom_call.1} parent=1 // pred_region
      %2579 = dma.done [#allocation4], 256
    $region41: #{tpu_custom_call.1} parent=1 // pred_fallthru
      _
    %2580 = vsyncpa [#allocation3], 1
    %2581 = vsyncpa [#allocation6], 1
    %2582 = vsyncpa [#allocation9], 1
    %2583 = vsyncpa [#allocation4], 1

</llo_original>
